<compile_context>
chip_gen: v7x
topology: tpu7x:2x2x1
jax: 0.10.0
libtpu: 0.0.40
codegen_flags: <defaults>
</compile_context>

<pallas_src>
import functools
import math

import jax
import jax.numpy as jnp
from jax.experimental import pallas as pl
from jax.experimental.pallas import tpu as pltpu


_SQRT_HALF = 0.7071067811865476


def _erf_f32(x):
    # Abramowitz & Stegun 7.1.26 polynomial approximation of erf,
    # max abs error 1.5e-7 (== float32-exact). Uses only VPU/EUP-friendly ops.
    a1, a2, a3, a4, a5 = 0.254829592, -0.284496736, 1.421413741, -1.453152027, 1.061405429
    p = 0.3275911
    ax = jnp.maximum(x, -x)
    t = 1.0 / (1.0 + p * ax)
    poly = ((((a5 * t + a4) * t + a3) * t + a2) * t + a1) * t
    y = 1.0 - poly * jnp.exp(-(ax * ax))
    return jnp.where(x >= 0.0, y, -y)


def _gelu_exact(x):
    # nn.GELU() default (erf-based).
    return 0.5 * x * (1.0 + _erf_f32(x * _SQRT_HALF))


def _layernorm(x, gamma, beta, eps):
    mean = jnp.mean(x, axis=-1, keepdims=True)
    var = jnp.mean(jnp.square(x - mean), axis=-1, keepdims=True)
    return (x - mean) * jax.lax.rsqrt(var + eps) * gamma + beta


def _fused_layer_kernel(x_ref, g1_ref, b1_ref, wqkv_ref, bqkv_ref,
                        wo_ref, bo_ref, g2_ref, b2_ref,
                        w1_ref, fb1_ref, w2_ref, fb2_ref, o_ref,
                        *, heads, eps):
    """One grid step == one batch element: all S rows of the full transformer layer."""
    x = x_ref[...].astype(jnp.float32)                      # (S, D)
    S, D = x.shape
    dk = D // heads
    scale = 1.0 / math.sqrt(dk)

    # ---- pre-attention LayerNorm ----
    z = _layernorm(x, g1_ref[...], b1_ref[...], eps)

    # ---- fused Q/K/V projection: one MXU pass, N = 3*D lanes ----
    qkv = jnp.dot(z, wqkv_ref[...], preferred_element_type=jnp.float32) + bqkv_ref[...]
    q = qkv[:, 0 * D:1 * D]
    k = qkv[:, 1 * D:2 * D]
    v = qkv[:, 2 * D:3 * D]

    # ---- per-head scaled dot-product attention (softmax over key dim) ----
    head_outs = []
    for h in range(heads):
        qh = q[:, h * dk:(h + 1) * dk]
        kh = k[:, h * dk:(h + 1) * dk]
        vh = v[:, h * dk:(h + 1) * dk]
        s = jax.lax.dot_general(qh, kh, (((1,), (1,)), ((), ())),
                                preferred_element_type=jnp.float32) * scale
        s = s - jnp.max(s, axis=-1, keepdims=True)
        p = jnp.exp(s)
        p = p * pl.reciprocal(jnp.sum(p, axis=-1, keepdims=True), approx=True)
        head_outs.append(jnp.dot(p, vh, preferred_element_type=jnp.float32))
    attn = jnp.concatenate(head_outs, axis=-1)              # (S, D)

    # ---- attention output projection + residual (dropout = identity, eval) ----
    x = x + jnp.dot(attn, wo_ref[...], preferred_element_type=jnp.float32) + bo_ref[...]

    # ---- pre-FFN LayerNorm + averaged ParallelMLP: fc1 -> exact GELU -> fc2 ----
    z2 = _layernorm(x, g2_ref[...], b2_ref[...], eps)
    h1 = jnp.dot(z2, w1_ref[...], preferred_element_type=jnp.float32) + fb1_ref[...]
    h1 = _gelu_exact(h1)
    ff = jnp.dot(h1, w2_ref[...], preferred_element_type=jnp.float32) + fb2_ref[...]

    # ---- second residual (dropout = identity, eval) ----
    o_ref[...] = (x + ff).astype(o_ref.dtype)


@functools.partial(jax.jit, static_argnames=("heads", "eps"))
def transformer_layer(x, params, *, heads, eps=1e-5):
    """TransformerLayer.forward. x: [seq, batch, d_model] (labml convention)."""
    S, B, D = x.shape
    F = params["w1"].shape[1]
    # Batch-major rows so each grid step sees one batch's contiguous (S, D) block.
    rows = jnp.transpose(x, (1, 0, 2)).reshape(B * S, D)

    const = lambda shape: pl.BlockSpec(shape, lambda b: (0, 0))  # VMEM-resident weights
    out = pl.pallas_call(
        functools.partial(_fused_layer_kernel, heads=heads, eps=eps),
        out_shape=jax.ShapeDtypeStruct((B * S, D), x.dtype),
        grid=(B,),
        in_specs=[
            pl.BlockSpec((S, D), lambda b: (b, 0)),   # this batch's rows of x
            const((1, D)), const((1, D)),             # LN1 gamma/beta
            const((D, 3 * D)), const((1, 3 * D)),     # fused QKV weight/bias
            const((D, D)), const((1, D)),             # attention out projection
            const((1, D)), const((1, D)),             # LN2 gamma/beta
            const((D, F)), const((1, F)),             # fc1 (averaged)
            const((F, D)), const((1, D)),             # fc2 (averaged)
        ],
        out_specs=pl.BlockSpec((S, D), lambda b: (b, 0)),
        compiler_params=pltpu.CompilerParams(dimension_semantics=("parallel",)),
    )(rows,
      params["ln1_g"], params["ln1_b"],
      params["wqkv"], params["bqkv"],
      params["wo"], params["bo"],
      params["ln2_g"], params["ln2_b"],
      params["w1"], params["b1"],
      params["w2"], params["b2"])
    return jnp.transpose(out.reshape(B, S, D), (1, 0, 2))


# --------------------------- parameters --------------------------------------

def _dense(key, din, dout, scale=0.02):
    kw, kb = jax.random.split(key)
    w = jax.random.normal(kw, (din, dout), jnp.float32) * scale
    b = jax.random.normal(kb, (dout,), jnp.float32) * scale
    return w, b


def init_raw_params(key, d_model, mlp_hidden):
    """Parameters mirroring the PyTorch module structure (separate Q/K/V/out linears,
    4 expert MLPs, two LayerNorms)."""
    ks = jax.random.split(key, 8)
    wq, bq = _dense(ks[0], d_model, d_model)
    wk, bk = _dense(ks[1], d_model, d_model)
    wv, bv = _dense(ks[2], d_model, d_model)
    wo, bo = _dense(ks[3], d_model, d_model)
    mlps = []
    for i in range(4):
        k1, k2 = jax.random.split(ks[4 + i])
        w1, b1 = _dense(k1, d_model, mlp_hidden)
        w2, b2 = _dense(k2, mlp_hidden, d_model)
        mlps.append(dict(w1=w1, b1=b1, w2=w2, b2=b2))
    return dict(
        ln1_g=jnp.ones((d_model,), jnp.float32), ln1_b=jnp.zeros((d_model,), jnp.float32),
        ln2_g=jnp.ones((d_model,), jnp.float32), ln2_b=jnp.zeros((d_model,), jnp.float32),
        attn=dict(wq=wq, bq=bq, wk=wk, bk=bk, wv=wv, bv=bv, wo=wo, bo=bo),
        mlps=mlps,
    )


def prepare_params(raw):
    """One-time parameter prep, hoisted out of the forward pass:
      * ParallelMLP(mlp_idx=None): avg_mlp fc1/fc2 = mean of the 4 expert MLPs
      * fuse Q/K/V projection weights into one [D, 3D] matmul (+ [1, 3D] bias)
      * reshape biases / LN affine params to (1, N) for in-kernel broadcast."""
    a = raw["attn"]
    d = a["wq"].shape[0]
    wqkv = jnp.concatenate([a["wq"], a["wk"], a["wv"]], axis=1)
    bqkv = jnp.concatenate([a["bq"], a["bk"], a["bv"]], axis=0).reshape(1, 3 * d)
    w1 = jnp.mean(jnp.stack([m["w1"] for m in raw["mlps"]]), axis=0)
    b1 = jnp.mean(jnp.stack([m["b1"] for m in raw["mlps"]]), axis=0)
    w2 = jnp.mean(jnp.stack([m["w2"] for m in raw["mlps"]]), axis=0)
    b2 = jnp.mean(jnp.stack([m["b2"] for m in raw["mlps"]]), axis=0)
    return dict(
        ln1_g=raw["ln1_g"].reshape(1, d), ln1_b=raw["ln1_b"].reshape(1, d),
        ln2_g=raw["ln2_g"].reshape(1, d), ln2_b=raw["ln2_b"].reshape(1, d),
        wqkv=wqkv, bqkv=bqkv,
        wo=a["wo"], bo=a["bo"].reshape(1, d),
        w1=w1, b1=b1.reshape(1, -1),
        w2=w2, b2=b2.reshape(1, d),
    )


# --------------------------- pure-JAX reference -------------------------------

def reference_forward(x, raw, heads, eps=1e-5):
    """Plain-JAX TransformerLayer.forward (eval mode) for a numerics check."""
    S, B, D = x.shape
    p = prepare_params(raw)
    dk = D // heads

    def ln(t, g, b):
        m = t.mean(-1, keepdims=True)
        v = jnp.square(t - m).mean(-1, keepdims=True)
        return (t - m) / jnp.sqrt(v + eps) * g.reshape(-1) + b.reshape(-1)

    z = ln(x, p["ln1_g"], p["ln1_b"])
    qkv = z @ p["wqkv"] + p["bqkv"].reshape(-1)
    q, k, v = jnp.split(qkv, 3, axis=-1)

    def split(t):   # [S,B,D] -> [B,H,S,dk]
        return t.reshape(S, B, heads, dk).transpose(1, 2, 0, 3)

    qh, kh, vh = split(q), split(k), split(v)
    s = jnp.einsum("bhqd,bhkd->bhqk", qh, kh) / math.sqrt(dk)
    attn = jax.nn.softmax(s, axis=-1)
    o = jnp.einsum("bhqk,bhkd->bhqd", attn, vh)
    o = o.transpose(2, 0, 1, 3).reshape(S, B, D)
    x = x + o @ p["wo"] + p["bo"].reshape(-1)

    z2 = ln(x, p["ln2_g"], p["ln2_b"])
    h = jax.nn.gelu(z2 @ p["w1"] + p["b1"].reshape(-1), approximate=False)
    ff = h @ p["w2"] + p["b2"].reshape(-1)
    return x + ff


# --------------------------------- main ---------------------------------------

if __name__ == "__main__":
    S, B, D = 16, 2, 128        # seq, batch, d_model (lane-dense: D % 128 == 0)
    heads = 4                   # d_k = 32
    mlp_hidden = 256

    key = jax.random.PRNGKey(0)
    kx, kp = jax.random.split(key)
    x = jax.random.normal(kx, (S, B, D), jnp.float32)     # [seq, batch, d_model]
    raw = init_raw_params(kp, D, mlp_hidden)
    params = prepare_params(raw)                          # hoisted: once, not per call

    y = transformer_layer(x, params, heads=heads)
    y = jax.block_until_ready(y)

    assert y.shape == (S, B, D)
    assert bool(jnp.all(jnp.isfinite(y)))

    with jax.default_matmul_precision("highest"):
        y_ref = reference_forward(x, raw, heads)
    max_err = float(jnp.max(jnp.abs(y - y_ref)))
    assert bool(jnp.allclose(y, y_ref, atol=2e-2, rtol=2e-2)), max_err

    print("KERNEL_OK")
</pallas_src>

<mosaic_0001>
module attributes {stable_mosaic.version = 11 : i64} {
  func.func @_fused_layer_kernel(%arg0: i32, %arg1: memref<16x128xf32, #tpu.memory_space<vmem>>, %arg2: memref<1x128xf32, #tpu.memory_space<vmem>>, %arg3: memref<1x128xf32, #tpu.memory_space<vmem>>, %arg4: memref<128x384xf32, #tpu.memory_space<vmem>>, %arg5: memref<1x384xf32, #tpu.memory_space<vmem>>, %arg6: memref<128x128xf32, #tpu.memory_space<vmem>>, %arg7: memref<1x128xf32, #tpu.memory_space<vmem>>, %arg8: memref<1x128xf32, #tpu.memory_space<vmem>>, %arg9: memref<1x128xf32, #tpu.memory_space<vmem>>, %arg10: memref<128x256xf32, #tpu.memory_space<vmem>>, %arg11: memref<1x256xf32, #tpu.memory_space<vmem>>, %arg12: memref<256x128xf32, #tpu.memory_space<vmem>>, %arg13: memref<1x128xf32, #tpu.memory_space<vmem>>, %arg14: memref<16x128xf32, #tpu.memory_space<vmem>>) attributes {dimension_semantics = [#tpu.dimension_semantics<parallel>], iteration_bounds = array<i64: 2>, scalar_prefetch = 0 : i64, scratch_operands = 0 : i64, tpu.core_type = #tpu.core_type<tc>, window_params = [{transform_indices = @transform_0, window_bounds = array<i64: 16, 128>}, {pipeline_mode = #tpu.pipeline_mode<synchronous>, transform_indices = @transform_1, window_bounds = array<i64: 1, 128>}, {pipeline_mode = #tpu.pipeline_mode<synchronous>, transform_indices = @transform_2, window_bounds = array<i64: 1, 128>}, {pipeline_mode = #tpu.pipeline_mode<synchronous>, transform_indices = @transform_3, window_bounds = array<i64: 128, 384>}, {pipeline_mode = #tpu.pipeline_mode<synchronous>, transform_indices = @transform_4, window_bounds = array<i64: 1, 384>}, {pipeline_mode = #tpu.pipeline_mode<synchronous>, transform_indices = @transform_5, window_bounds = array<i64: 128, 128>}, {pipeline_mode = #tpu.pipeline_mode<synchronous>, transform_indices = @transform_6, window_bounds = array<i64: 1, 128>}, {pipeline_mode = #tpu.pipeline_mode<synchronous>, transform_indices = @transform_7, window_bounds = array<i64: 1, 128>}, {pipeline_mode = #tpu.pipeline_mode<synchronous>, transform_indices = @transform_8, window_bounds = array<i64: 1, 128>}, {pipeline_mode = #tpu.pipeline_mode<synchronous>, transform_indices = @transform_9, window_bounds = array<i64: 128, 256>}, {pipeline_mode = #tpu.pipeline_mode<synchronous>, transform_indices = @transform_10, window_bounds = array<i64: 1, 256>}, {pipeline_mode = #tpu.pipeline_mode<synchronous>, transform_indices = @transform_11, window_bounds = array<i64: 256, 128>}, {pipeline_mode = #tpu.pipeline_mode<synchronous>, transform_indices = @transform_12, window_bounds = array<i64: 1, 128>}, {transform_indices = @transform_13, window_bounds = array<i64: 16, 128>}]} {
    %c0 = arith.constant 0 : index
    %c0_0 = arith.constant 0 : index
    %0 = vector.load %arg1[%c0, %c0_0] : memref<16x128xf32, #tpu.memory_space<vmem>>, vector<16x128xf32>
    %c0_1 = arith.constant 0 : index
    %c0_2 = arith.constant 0 : index
    %1 = vector.load %arg2[%c0_1, %c0_2] : memref<1x128xf32, #tpu.memory_space<vmem>>, vector<1x128xf32>
    %c0_3 = arith.constant 0 : index
    %c0_4 = arith.constant 0 : index
    %2 = vector.load %arg3[%c0_3, %c0_4] : memref<1x128xf32, #tpu.memory_space<vmem>>, vector<1x128xf32>
    %cst = arith.constant dense<0.000000e+00> : vector<16xf32>
    %3 = vector.multi_reduction <add>, %0, %cst [1] : vector<16x128xf32> to vector<16xf32>
    %4 = vector.shape_cast %3 : vector<16xf32> to vector<16x1xf32>
    %cst_5 = arith.constant 1.280000e+02 : f32
    %5 = vector.broadcast %cst_5 : f32 to vector<16x1xf32>
    %6 = arith.divf %4, %5 : vector<16x1xf32>
    %7 = vector.broadcast %6 : vector<16x1xf32> to vector<16x128xf32>
    %8 = arith.subf %0, %7 : vector<16x128xf32>
    %9 = arith.mulf %8, %8 : vector<16x128xf32>
    %cst_6 = arith.constant dense<0.000000e+00> : vector<16xf32>
    %10 = vector.multi_reduction <add>, %9, %cst_6 [1] : vector<16x128xf32> to vector<16xf32>
    %11 = vector.shape_cast %10 : vector<16xf32> to vector<16x1xf32>
    %cst_7 = arith.constant 1.280000e+02 : f32
    %12 = vector.broadcast %cst_7 : f32 to vector<16x1xf32>
    %13 = arith.divf %11, %12 : vector<16x1xf32>
    %14 = vector.broadcast %6 : vector<16x1xf32> to vector<16x128xf32>
    %15 = arith.subf %0, %14 : vector<16x128xf32>
    %cst_8 = arith.constant 9.99999974E-6 : f32
    %16 = vector.broadcast %cst_8 : f32 to vector<16x1xf32>
    %17 = arith.addf %13, %16 : vector<16x1xf32>
    %18 = math.rsqrt %17 : vector<16x1xf32>
    %19 = vector.broadcast %18 : vector<16x1xf32> to vector<16x128xf32>
    %20 = arith.mulf %15, %19 : vector<16x128xf32>
    %21 = vector.broadcast %1 : vector<1x128xf32> to vector<16x128xf32>
    %22 = arith.mulf %20, %21 : vector<16x128xf32>
    %23 = vector.broadcast %2 : vector<1x128xf32> to vector<16x128xf32>
    %24 = arith.addf %22, %23 : vector<16x128xf32>
    %c0_9 = arith.constant 0 : index
    %c0_10 = arith.constant 0 : index
    %25 = vector.load %arg4[%c0_9, %c0_10] : memref<128x384xf32, #tpu.memory_space<vmem>>, vector<128x384xf32>
    %cst_11 = arith.constant dense<0.000000e+00> : vector<16x384xf32>
    %26 = tpu.matmul %24, %25, %cst_11 {dimension_numbers = #tpu.dot_dimension_numbers<[1], [0], [0], [1], [0, 0, 1, 1], [], []>} : vector<16x128xf32>, vector<128x384xf32>, vector<16x384xf32> -> vector<16x384xf32>
    %c0_12 = arith.constant 0 : index
    %c0_13 = arith.constant 0 : index
    %27 = vector.load %arg5[%c0_12, %c0_13] : memref<1x384xf32, #tpu.memory_space<vmem>>, vector<1x384xf32>
    %28 = vector.broadcast %27 : vector<1x384xf32> to vector<16x384xf32>
    %29 = arith.addf %26, %28 : vector<16x384xf32>
    %30 = vector.extract_strided_slice %29 {offsets = [0, 0], sizes = [16, 128], strides = [1, 1]} : vector<16x384xf32> to vector<16x128xf32>
    %31 = vector.extract_strided_slice %29 {offsets = [0, 128], sizes = [16, 128], strides = [1, 1]} : vector<16x384xf32> to vector<16x128xf32>
    %32 = vector.extract_strided_slice %29 {offsets = [0, 256], sizes = [16, 128], strides = [1, 1]} : vector<16x384xf32> to vector<16x128xf32>
    %33 = vector.extract_strided_slice %30 {offsets = [0, 0], sizes = [16, 32], strides = [1, 1]} : vector<16x128xf32> to vector<16x32xf32>
    %34 = vector.extract_strided_slice %31 {offsets = [0, 0], sizes = [16, 32], strides = [1, 1]} : vector<16x128xf32> to vector<16x32xf32>
    %35 = vector.extract_strided_slice %32 {offsets = [0, 0], sizes = [16, 32], strides = [1, 1]} : vector<16x128xf32> to vector<16x32xf32>
    %cst_14 = arith.constant dense<0.000000e+00> : vector<16x16xf32>
    %36 = tpu.matmul %33, %34, %cst_14 {dimension_numbers = #tpu.dot_dimension_numbers<[1], [1], [0], [0], [0, 0, 1, 0], [], []>} : vector<16x32xf32>, vector<16x32xf32>, vector<16x16xf32> -> vector<16x16xf32>
    %cst_15 = arith.constant 0.176776692 : f32
    %37 = vector.broadcast %cst_15 : f32 to vector<16x16xf32>
    %38 = arith.mulf %36, %37 : vector<16x16xf32>
    %cst_16 = arith.constant dense<0xFF800000> : vector<16xf32>
    %39 = vector.multi_reduction <maximumf>, %38, %cst_16 [1] : vector<16x16xf32> to vector<16xf32>
    %40 = vector.shape_cast %39 : vector<16xf32> to vector<16x1xf32>
    %41 = vector.broadcast %40 : vector<16x1xf32> to vector<16x16xf32>
    %42 = arith.subf %38, %41 : vector<16x16xf32>
    %43 = math.exp %42 : vector<16x16xf32>
    %cst_17 = arith.constant dense<0.000000e+00> : vector<16xf32>
    %44 = vector.multi_reduction <add>, %43, %cst_17 [1] : vector<16x16xf32> to vector<16xf32>
    %45 = vector.shape_cast %44 : vector<16xf32> to vector<16x1xf32>
    %46 = tpu.reciprocal %45 {approx = true} : vector<16x1xf32> -> vector<16x1xf32>
    %47 = vector.broadcast %46 : vector<16x1xf32> to vector<16x16xf32>
    %48 = arith.mulf %43, %47 : vector<16x16xf32>
    %cst_18 = arith.constant dense<0.000000e+00> : vector<16x32xf32>
    %49 = tpu.matmul %48, %35, %cst_18 {dimension_numbers = #tpu.dot_dimension_numbers<[1], [0], [0], [1], [0, 0, 1, 1], [], []>} : vector<16x16xf32>, vector<16x32xf32>, vector<16x32xf32> -> vector<16x32xf32>
    %50 = vector.extract_strided_slice %30 {offsets = [0, 32], sizes = [16, 32], strides = [1, 1]} : vector<16x128xf32> to vector<16x32xf32>
    %51 = vector.extract_strided_slice %31 {offsets = [0, 32], sizes = [16, 32], strides = [1, 1]} : vector<16x128xf32> to vector<16x32xf32>
    %52 = vector.extract_strided_slice %32 {offsets = [0, 32], sizes = [16, 32], strides = [1, 1]} : vector<16x128xf32> to vector<16x32xf32>
    %cst_19 = arith.constant dense<0.000000e+00> : vector<16x16xf32>
    %53 = tpu.matmul %50, %51, %cst_19 {dimension_numbers = #tpu.dot_dimension_numbers<[1], [1], [0], [0], [0, 0, 1, 0], [], []>} : vector<16x32xf32>, vector<16x32xf32>, vector<16x16xf32> -> vector<16x16xf32>
    %cst_20 = arith.constant 0.176776692 : f32
    %54 = vector.broadcast %cst_20 : f32 to vector<16x16xf32>
    %55 = arith.mulf %53, %54 : vector<16x16xf32>
    %cst_21 = arith.constant dense<0xFF800000> : vector<16xf32>
    %56 = vector.multi_reduction <maximumf>, %55, %cst_21 [1] : vector<16x16xf32> to vector<16xf32>
    %57 = vector.shape_cast %56 : vector<16xf32> to vector<16x1xf32>
    %58 = vector.broadcast %57 : vector<16x1xf32> to vector<16x16xf32>
    %59 = arith.subf %55, %58 : vector<16x16xf32>
    %60 = math.exp %59 : vector<16x16xf32>
    %cst_22 = arith.constant dense<0.000000e+00> : vector<16xf32>
    %61 = vector.multi_reduction <add>, %60, %cst_22 [1] : vector<16x16xf32> to vector<16xf32>
    %62 = vector.shape_cast %61 : vector<16xf32> to vector<16x1xf32>
    %63 = tpu.reciprocal %62 {approx = true} : vector<16x1xf32> -> vector<16x1xf32>
    %64 = vector.broadcast %63 : vector<16x1xf32> to vector<16x16xf32>
    %65 = arith.mulf %60, %64 : vector<16x16xf32>
    %cst_23 = arith.constant dense<0.000000e+00> : vector<16x32xf32>
    %66 = tpu.matmul %65, %52, %cst_23 {dimension_numbers = #tpu.dot_dimension_numbers<[1], [0], [0], [1], [0, 0, 1, 1], [], []>} : vector<16x16xf32>, vector<16x32xf32>, vector<16x32xf32> -> vector<16x32xf32>
    %67 = vector.extract_strided_slice %30 {offsets = [0, 64], sizes = [16, 32], strides = [1, 1]} : vector<16x128xf32> to vector<16x32xf32>
    %68 = vector.extract_strided_slice %31 {offsets = [0, 64], sizes = [16, 32], strides = [1, 1]} : vector<16x128xf32> to vector<16x32xf32>
    %69 = vector.extract_strided_slice %32 {offsets = [0, 64], sizes = [16, 32], strides = [1, 1]} : vector<16x128xf32> to vector<16x32xf32>
    %cst_24 = arith.constant dense<0.000000e+00> : vector<16x16xf32>
    %70 = tpu.matmul %67, %68, %cst_24 {dimension_numbers = #tpu.dot_dimension_numbers<[1], [1], [0], [0], [0, 0, 1, 0], [], []>} : vector<16x32xf32>, vector<16x32xf32>, vector<16x16xf32> -> vector<16x16xf32>
    %cst_25 = arith.constant 0.176776692 : f32
    %71 = vector.broadcast %cst_25 : f32 to vector<16x16xf32>
    %72 = arith.mulf %70, %71 : vector<16x16xf32>
    %cst_26 = arith.constant dense<0xFF800000> : vector<16xf32>
    %73 = vector.multi_reduction <maximumf>, %72, %cst_26 [1] : vector<16x16xf32> to vector<16xf32>
    %74 = vector.shape_cast %73 : vector<16xf32> to vector<16x1xf32>
    %75 = vector.broadcast %74 : vector<16x1xf32> to vector<16x16xf32>
    %76 = arith.subf %72, %75 : vector<16x16xf32>
    %77 = math.exp %76 : vector<16x16xf32>
    %cst_27 = arith.constant dense<0.000000e+00> : vector<16xf32>
    %78 = vector.multi_reduction <add>, %77, %cst_27 [1] : vector<16x16xf32> to vector<16xf32>
    %79 = vector.shape_cast %78 : vector<16xf32> to vector<16x1xf32>
    %80 = tpu.reciprocal %79 {approx = true} : vector<16x1xf32> -> vector<16x1xf32>
    %81 = vector.broadcast %80 : vector<16x1xf32> to vector<16x16xf32>
    %82 = arith.mulf %77, %81 : vector<16x16xf32>
    %cst_28 = arith.constant dense<0.000000e+00> : vector<16x32xf32>
    %83 = tpu.matmul %82, %69, %cst_28 {dimension_numbers = #tpu.dot_dimension_numbers<[1], [0], [0], [1], [0, 0, 1, 1], [], []>} : vector<16x16xf32>, vector<16x32xf32>, vector<16x32xf32> -> vector<16x32xf32>
    %84 = vector.extract_strided_slice %30 {offsets = [0, 96], sizes = [16, 32], strides = [1, 1]} : vector<16x128xf32> to vector<16x32xf32>
    %85 = vector.extract_strided_slice %31 {offsets = [0, 96], sizes = [16, 32], strides = [1, 1]} : vector<16x128xf32> to vector<16x32xf32>
    %86 = vector.extract_strided_slice %32 {offsets = [0, 96], sizes = [16, 32], strides = [1, 1]} : vector<16x128xf32> to vector<16x32xf32>
    %cst_29 = arith.constant dense<0.000000e+00> : vector<16x16xf32>
    %87 = tpu.matmul %84, %85, %cst_29 {dimension_numbers = #tpu.dot_dimension_numbers<[1], [1], [0], [0], [0, 0, 1, 0], [], []>} : vector<16x32xf32>, vector<16x32xf32>, vector<16x16xf32> -> vector<16x16xf32>
    %cst_30 = arith.constant 0.176776692 : f32
    %88 = vector.broadcast %cst_30 : f32 to vector<16x16xf32>
    %89 = arith.mulf %87, %88 : vector<16x16xf32>
    %cst_31 = arith.constant dense<0xFF800000> : vector<16xf32>
    %90 = vector.multi_reduction <maximumf>, %89, %cst_31 [1] : vector<16x16xf32> to vector<16xf32>
    %91 = vector.shape_cast %90 : vector<16xf32> to vector<16x1xf32>
    %92 = vector.broadcast %91 : vector<16x1xf32> to vector<16x16xf32>
    %93 = arith.subf %89, %92 : vector<16x16xf32>
    %94 = math.exp %93 : vector<16x16xf32>
    %cst_32 = arith.constant dense<0.000000e+00> : vector<16xf32>
    %95 = vector.multi_reduction <add>, %94, %cst_32 [1] : vector<16x16xf32> to vector<16xf32>
    %96 = vector.shape_cast %95 : vector<16xf32> to vector<16x1xf32>
    %97 = tpu.reciprocal %96 {approx = true} : vector<16x1xf32> -> vector<16x1xf32>
    %98 = vector.broadcast %97 : vector<16x1xf32> to vector<16x16xf32>
    %99 = arith.mulf %94, %98 : vector<16x16xf32>
    %cst_33 = arith.constant dense<0.000000e+00> : vector<16x32xf32>
    %100 = tpu.matmul %99, %86, %cst_33 {dimension_numbers = #tpu.dot_dimension_numbers<[1], [0], [0], [1], [0, 0, 1, 1], [], []>} : vector<16x16xf32>, vector<16x32xf32>, vector<16x32xf32> -> vector<16x32xf32>
    %101 = tpu.concatenate %49, %66, %83, %100 in 1 : vector<16x32xf32>, vector<16x32xf32>, vector<16x32xf32>, vector<16x32xf32> -> vector<16x128xf32>
    %c0_34 = arith.constant 0 : index
    %c0_35 = arith.constant 0 : index
    %102 = vector.load %arg6[%c0_34, %c0_35] : memref<128x128xf32, #tpu.memory_space<vmem>>, vector<128x128xf32>
    %cst_36 = arith.constant dense<0.000000e+00> : vector<16x128xf32>
    %103 = tpu.matmul %101, %102, %cst_36 {dimension_numbers = #tpu.dot_dimension_numbers<[1], [0], [0], [1], [0, 0, 1, 1], [], []>} : vector<16x128xf32>, vector<128x128xf32>, vector<16x128xf32> -> vector<16x128xf32>
    %104 = arith.addf %0, %103 : vector<16x128xf32>
    %c0_37 = arith.constant 0 : index
    %c0_38 = arith.constant 0 : index
    %105 = vector.load %arg7[%c0_37, %c0_38] : memref<1x128xf32, #tpu.memory_space<vmem>>, vector<1x128xf32>
    %106 = vector.broadcast %105 : vector<1x128xf32> to vector<16x128xf32>
    %107 = arith.addf %104, %106 : vector<16x128xf32>
    %c0_39 = arith.constant 0 : index
    %c0_40 = arith.constant 0 : index
    %108 = vector.load %arg8[%c0_39, %c0_40] : memref<1x128xf32, #tpu.memory_space<vmem>>, vector<1x128xf32>
    %c0_41 = arith.constant 0 : index
    %c0_42 = arith.constant 0 : index
    %109 = vector.load %arg9[%c0_41, %c0_42] : memref<1x128xf32, #tpu.memory_space<vmem>>, vector<1x128xf32>
    %cst_43 = arith.constant dense<0.000000e+00> : vector<16xf32>
    %110 = vector.multi_reduction <add>, %107, %cst_43 [1] : vector<16x128xf32> to vector<16xf32>
    %111 = vector.shape_cast %110 : vector<16xf32> to vector<16x1xf32>
    %cst_44 = arith.constant 1.280000e+02 : f32
    %112 = vector.broadcast %cst_44 : f32 to vector<16x1xf32>
    %113 = arith.divf %111, %112 : vector<16x1xf32>
    %114 = vector.broadcast %113 : vector<16x1xf32> to vector<16x128xf32>
    %115 = arith.subf %107, %114 : vector<16x128xf32>
    %116 = arith.mulf %115, %115 : vector<16x128xf32>
    %cst_45 = arith.constant dense<0.000000e+00> : vector<16xf32>
    %117 = vector.multi_reduction <add>, %116, %cst_45 [1] : vector<16x128xf32> to vector<16xf32>
    %118 = vector.shape_cast %117 : vector<16xf32> to vector<16x1xf32>
    %cst_46 = arith.constant 1.280000e+02 : f32
    %119 = vector.broadcast %cst_46 : f32 to vector<16x1xf32>
    %120 = arith.divf %118, %119 : vector<16x1xf32>
    %121 = vector.broadcast %113 : vector<16x1xf32> to vector<16x128xf32>
    %122 = arith.subf %107, %121 : vector<16x128xf32>
    %cst_47 = arith.constant 9.99999974E-6 : f32
    %123 = vector.broadcast %cst_47 : f32 to vector<16x1xf32>
    %124 = arith.addf %120, %123 : vector<16x1xf32>
    %125 = math.rsqrt %124 : vector<16x1xf32>
    %126 = vector.broadcast %125 : vector<16x1xf32> to vector<16x128xf32>
    %127 = arith.mulf %122, %126 : vector<16x128xf32>
    %128 = vector.broadcast %108 : vector<1x128xf32> to vector<16x128xf32>
    %129 = arith.mulf %127, %128 : vector<16x128xf32>
    %130 = vector.broadcast %109 : vector<1x128xf32> to vector<16x128xf32>
    %131 = arith.addf %129, %130 : vector<16x128xf32>
    %c0_48 = arith.constant 0 : index
    %c0_49 = arith.constant 0 : index
    %132 = vector.load %arg10[%c0_48, %c0_49] : memref<128x256xf32, #tpu.memory_space<vmem>>, vector<128x256xf32>
    %cst_50 = arith.constant dense<0.000000e+00> : vector<16x256xf32>
    %133 = tpu.matmul %131, %132, %cst_50 {dimension_numbers = #tpu.dot_dimension_numbers<[1], [0], [0], [1], [0, 0, 1, 1], [], []>} : vector<16x128xf32>, vector<128x256xf32>, vector<16x256xf32> -> vector<16x256xf32>
    %c0_51 = arith.constant 0 : index
    %c0_52 = arith.constant 0 : index
    %134 = vector.load %arg11[%c0_51, %c0_52] : memref<1x256xf32, #tpu.memory_space<vmem>>, vector<1x256xf32>
    %135 = vector.broadcast %134 : vector<1x256xf32> to vector<16x256xf32>
    %136 = arith.addf %133, %135 : vector<16x256xf32>
    %cst_53 = arith.constant 5.000000e-01 : f32
    %137 = vector.broadcast %cst_53 : f32 to vector<16x256xf32>
    %138 = arith.mulf %137, %136 : vector<16x256xf32>
    %cst_54 = arith.constant 0.707106769 : f32
    %139 = vector.broadcast %cst_54 : f32 to vector<16x256xf32>
    %140 = arith.mulf %136, %139 : vector<16x256xf32>
    %cst_55 = arith.constant 0.000000e+00 : f32
    %141 = vector.broadcast %cst_55 : f32 to vector<16x256xf32>
    %142 = arith.subf %141, %140 : vector<16x256xf32>
    %143 = arith.maximumf %140, %142 : vector<16x256xf32>
    %cst_56 = arith.constant 0.327591091 : f32
    %144 = vector.broadcast %cst_56 : f32 to vector<16x256xf32>
    %145 = arith.mulf %144, %143 : vector<16x256xf32>
    %cst_57 = arith.constant 1.000000e+00 : f32
    %146 = vector.broadcast %cst_57 : f32 to vector<16x256xf32>
    %147 = arith.addf %146, %145 : vector<16x256xf32>
    %cst_58 = arith.constant 1.000000e+00 : f32
    %148 = vector.broadcast %cst_58 : f32 to vector<16x256xf32>
    %149 = arith.divf %148, %147 : vector<16x256xf32>
    %cst_59 = arith.constant 1.06140542 : f32
    %150 = vector.broadcast %cst_59 : f32 to vector<16x256xf32>
    %151 = arith.mulf %150, %149 : vector<16x256xf32>
    %cst_60 = arith.constant -1.45315206 : f32
    %152 = vector.broadcast %cst_60 : f32 to vector<16x256xf32>
    %153 = arith.addf %151, %152 : vector<16x256xf32>
    %154 = arith.mulf %153, %149 : vector<16x256xf32>
    %cst_61 = arith.constant 1.42141378 : f32
    %155 = vector.broadcast %cst_61 : f32 to vector<16x256xf32>
    %156 = arith.addf %154, %155 : vector<16x256xf32>
    %157 = arith.mulf %156, %149 : vector<16x256xf32>
    %cst_62 = arith.constant -0.284496725 : f32
    %158 = vector.broadcast %cst_62 : f32 to vector<16x256xf32>
    %159 = arith.addf %157, %158 : vector<16x256xf32>
    %160 = arith.mulf %159, %149 : vector<16x256xf32>
    %cst_63 = arith.constant 0.254829586 : f32
    %161 = vector.broadcast %cst_63 : f32 to vector<16x256xf32>
    %162 = arith.addf %160, %161 : vector<16x256xf32>
    %163 = arith.mulf %162, %149 : vector<16x256xf32>
    %164 = arith.mulf %143, %143 : vector<16x256xf32>
    %cst_64 = arith.constant 0.000000e+00 : f32
    %165 = vector.broadcast %cst_64 : f32 to vector<16x256xf32>
    %166 = arith.subf %165, %164 : vector<16x256xf32>
    %167 = math.exp %166 : vector<16x256xf32>
    %168 = arith.mulf %163, %167 : vector<16x256xf32>
    %cst_65 = arith.constant 1.000000e+00 : f32
    %169 = vector.broadcast %cst_65 : f32 to vector<16x256xf32>
    %170 = arith.subf %169, %168 : vector<16x256xf32>
    %cst_66 = arith.constant 0.000000e+00 : f32
    %171 = vector.broadcast %cst_66 : f32 to vector<16x256xf32>
    %172 = arith.cmpf oge, %140, %171 : vector<16x256xf32>
    %cst_67 = arith.constant 0.000000e+00 : f32
    %173 = vector.broadcast %cst_67 : f32 to vector<16x256xf32>
    %174 = arith.subf %173, %170 : vector<16x256xf32>
    %175 = arith.select %172, %170, %174 : vector<16x256xi1>, vector<16x256xf32>
    %cst_68 = arith.constant 1.000000e+00 : f32
    %176 = vector.broadcast %cst_68 : f32 to vector<16x256xf32>
    %177 = arith.addf %176, %175 : vector<16x256xf32>
    %178 = arith.mulf %138, %177 : vector<16x256xf32>
    %c0_69 = arith.constant 0 : index
    %c0_70 = arith.constant 0 : index
    %179 = vector.load %arg12[%c0_69, %c0_70] : memref<256x128xf32, #tpu.memory_space<vmem>>, vector<256x128xf32>
    %cst_71 = arith.constant dense<0.000000e+00> : vector<16x128xf32>
    %180 = tpu.matmul %178, %179, %cst_71 {dimension_numbers = #tpu.dot_dimension_numbers<[1], [0], [0], [1], [0, 0, 1, 1], [], []>} : vector<16x256xf32>, vector<256x128xf32>, vector<16x128xf32> -> vector<16x128xf32>
    %c0_72 = arith.constant 0 : index
    %c0_73 = arith.constant 0 : index
    %181 = vector.load %arg13[%c0_72, %c0_73] : memref<1x128xf32, #tpu.memory_space<vmem>>, vector<1x128xf32>
    %182 = vector.broadcast %181 : vector<1x128xf32> to vector<16x128xf32>
    %183 = arith.addf %180, %182 : vector<16x128xf32>
    %184 = arith.addf %107, %183 : vector<16x128xf32>
    %c0_74 = arith.constant 0 : index
    %c0_75 = arith.constant 0 : index
    %185 = vector.load %arg14[%c0_74, %c0_75] : memref<16x128xf32, #tpu.memory_space<vmem>>, vector<16x128xf32>
    tpu.vector_store %arg14[%c0_74, %c0_75], %184 {strides = array<i32>} : memref<16x128xf32, #tpu.memory_space<vmem>>, vector<16x128xf32>,
    return
  }
  func.func @transform_0(%arg0: i32) -> (i32, i32) {
    %c0_i32 = arith.constant 0 : i32
    %c0_i32_0 = arith.constant 0 : i32
    return %arg0, %c0_i32 : i32, i32
  }
  func.func @transform_1(%arg0: i32) -> (i32, i32) {
    %c0_i32 = arith.constant 0 : i32
    %c0_i32_0 = arith.constant 0 : i32
    %c0_i32_1 = arith.constant 0 : i32
    return %c0_i32, %c0_i32_0 : i32, i32
  }
  func.func @transform_2(%arg0: i32) -> (i32, i32) {
    %c0_i32 = arith.constant 0 : i32
    %c0_i32_0 = arith.constant 0 : i32
    %c0_i32_1 = arith.constant 0 : i32
    return %c0_i32, %c0_i32_0 : i32, i32
  }
  func.func @transform_3(%arg0: i32) -> (i32, i32) {
    %c0_i32 = arith.constant 0 : i32
    %c0_i32_0 = arith.constant 0 : i32
    %c0_i32_1 = arith.constant 0 : i32
    return %c0_i32, %c0_i32_0 : i32, i32
  }
  func.func @transform_4(%arg0: i32) -> (i32, i32) {
    %c0_i32 = arith.constant 0 : i32
    %c0_i32_0 = arith.constant 0 : i32
    %c0_i32_1 = arith.constant 0 : i32
    return %c0_i32, %c0_i32_0 : i32, i32
  }
  func.func @transform_5(%arg0: i32) -> (i32, i32) {
    %c0_i32 = arith.constant 0 : i32
    %c0_i32_0 = arith.constant 0 : i32
    %c0_i32_1 = arith.constant 0 : i32
    return %c0_i32, %c0_i32_0 : i32, i32
  }
  func.func @transform_6(%arg0: i32) -> (i32, i32) {
    %c0_i32 = arith.constant 0 : i32
    %c0_i32_0 = arith.constant 0 : i32
    %c0_i32_1 = arith.constant 0 : i32
    return %c0_i32, %c0_i32_0 : i32, i32
  }
  func.func @transform_7(%arg0: i32) -> (i32, i32) {
    %c0_i32 = arith.constant 0 : i32
    %c0_i32_0 = arith.constant 0 : i32
    %c0_i32_1 = arith.constant 0 : i32
    return %c0_i32, %c0_i32_0 : i32, i32
  }
  func.func @transform_8(%arg0: i32) -> (i32, i32) {
    %c0_i32 = arith.constant 0 : i32
    %c0_i32_0 = arith.constant 0 : i32
    %c0_i32_1 = arith.constant 0 : i32
    return %c0_i32, %c0_i32_0 : i32, i32
  }
  func.func @transform_9(%arg0: i32) -> (i32, i32) {
    %c0_i32 = arith.constant 0 : i32
    %c0_i32_0 = arith.constant 0 : i32
    %c0_i32_1 = arith.constant 0 : i32
    return %c0_i32, %c0_i32_0 : i32, i32
  }
  func.func @transform_10(%arg0: i32) -> (i32, i32) {
    %c0_i32 = arith.constant 0 : i32
    %c0_i32_0 = arith.constant 0 : i32
    %c0_i32_1 = arith.constant 0 : i32
    return %c0_i32, %c0_i32_0 : i32, i32
  }
  func.func @transform_11(%arg0: i32) -> (i32, i32) {
    %c0_i32 = arith.constant 0 : i32
    %c0_i32_0 = arith.constant 0 : i32
    %c0_i32_1 = arith.constant 0 : i32
    return %c0_i32, %c0_i32_0 : i32, i32
  }
  func.func @transform_12(%arg0: i32) -> (i32, i32) {
    %c0_i32 = arith.constant 0 : i32
    %c0_i32_0 = arith.constant 0 : i32
    %c0_i32_1 = arith.constant 0 : i32
    return %c0_i32, %c0_i32_0 : i32, i32
  }
  func.func @transform_13(%arg0: i32) -> (i32, i32) {
    %c0_i32 = arith.constant 0 : i32
    %c0_i32_0 = arith.constant 0 : i32
    return %arg0, %c0_i32 : i32, i32
  }
}

</mosaic_0001>

<llo_original>
// kernel: transformer_layer.1
$region0: #{transformer_layer.1}
  #allocation0 [shape = 'u32[]', space=smem, size = 0x4, offset = 0x4, fixed_abs, tag = 'smem constant byte address 0x4 - core index']
  #allocation1 [shape = 'u32[144,128]{1,0:T(1,128)}', space=vmem, size = 0x12000, scoped, tag = 'internal scratch']
  %s0 = inlined_call_operand.vmem [shape: f32[32,128], index: 0, kind: input, shape index: {}]
  %s1 = inlined_call_operand.vmem [shape: f32[1,128], index: 1, kind: input, shape index: {}]
  %s2 = inlined_call_operand.vmem [shape: f32[1,128], index: 2, kind: input, shape index: {}]
  %s3 = inlined_call_operand.hbm [shape: f32[128,384], index: 3, kind: input, shape index: {}]
  %s4 = inlined_call_operand.vmem [shape: f32[1,384], index: 4, kind: input, shape index: {}]
  %s5 = inlined_call_operand.hbm [shape: f32[128,128], index: 5, kind: input, shape index: {}]
  %s6 = inlined_call_operand.vmem [shape: f32[1,128], index: 6, kind: input, shape index: {}]
  %s7 = inlined_call_operand.vmem [shape: f32[1,128], index: 7, kind: input, shape index: {}]
  %s8 = inlined_call_operand.vmem [shape: f32[1,128], index: 8, kind: input, shape index: {}]
  %s9 = inlined_call_operand.hbm [shape: f32[128,256], index: 9, kind: input, shape index: {}]
  %s10 = inlined_call_operand.vmem [shape: f32[1,256], index: 10, kind: input, shape index: {}]
  %s11 = inlined_call_operand.hbm [shape: f32[256,128], index: 11, kind: input, shape index: {}]
  %s12 = inlined_call_operand.vmem [shape: f32[1,128], index: 12, kind: input, shape index: {}]
  %s13 = inlined_call_operand.vmem [shape: f32[32,128], index: 13, kind: output, shape index: {}]
  %s14 = sld [smem:[#allocation0]]
  $region101: #{transformer_layer.1} parent=0
    _
  %s16 = ssub.s32 1, %s14
  %s17 = scalar_select 0, %s16, %s14
  $region1: #{transformer_layer.1} parent=0
    #allocation2 [shape = 'u8[196608]{0}', space=vmem, size = 0x30000, scoped, tag = 'input window, operand 3, single buffered']
    #allocation3 [shape = 's32[2]{0}', space=sflag, size = 0x8, scoped, tag = 'scoped memory for transformer_layer.1']
    #allocation4 [shape = 'u8[65536]{0}', space=vmem, size = 0x10000, scoped, tag = 'input window, operand 5, single buffered']
    #allocation5 [shape = 's32[1]{0}', space=sflag, size = 0x4, scoped, tag = 'scoped memory for transformer_layer.1']
    #allocation6 [shape = 'u8[131072]{0}', space=vmem, size = 0x20000, scoped, tag = 'input window, operand 9, single buffered']
    #allocation7 [shape = 'u8[131072]{0}', space=vmem, size = 0x20000, scoped, tag = 'input window, operand 11, single buffered']
    #allocation8 [shape = 's32[1]{0}', space=sflag, size = 0x4, scoped, tag = 'scoped memory for transformer_layer.1']
    %18 = vsyncpa [#allocation3], 0
    %19 = vsyncpa [#allocation5], 0
    %20 = vsyncpa [#allocation8], 0
    loop: start=0, step=1, limit=4
    $region2: #{transformer_layer.1} parent=1 // loop_pre_header
      _
    $region3: #{transformer_layer.1} parent=1 // loop_header
      %s22 = sphi 0, %s26
      %p23 = scmp.ge.s32.totalorder %s22, 4
      %s32 = sphi 0, %s34
      %s35 = sphi 0, %s32
      %s36 = sphi 0, %s35
      %s52 = sphi 0, %s36
      %s56 = sphi 0, %s56
      %s58 = sphi 0, %s56
      %s59 = sphi 0, %s58
      %s73 = sphi 0, %s59
      %s77 = sphi 0, %s77
      %s79 = sphi 0, %s77
      %s80 = sphi 0, %s79
      %s94 = sphi 0, %s80
      %s98 = sphi 0, %s98
      %s100 = sphi 0, %s98
      %s101 = sphi 0, %s100
      %s115 = sphi 0, %s101
      %s119 = sphi 0, %s119
      %s121 = sphi 0, %s119
      %s122 = sphi 0, %s121
      %s136 = sphi 0, %s122
      %s140 = sphi 0, %s140
      %s142 = sphi 0, %s140
      %s143 = sphi 0, %s142
      %s157 = sphi 0, %s143
      %s161 = sphi 0, %s161
      %s163 = sphi 0, %s161
      %s164 = sphi 0, %s163
      %s178 = sphi 0, %s164
      %s182 = sphi 0, %s182
      %s184 = sphi 0, %s182
      %s185 = sphi 0, %s184
      %s199 = sphi 0, %s185
      %s203 = sphi 0, %s203
      %s205 = sphi 0, %s203
      %s206 = sphi 0, %s205
      %s220 = sphi 0, %s206
      %s224 = sphi 0, %s224
      %s226 = sphi 0, %s224
      %s227 = sphi 0, %s226
      %s241 = sphi 0, %s227
      %s245 = sphi 0, %s245
      %s247 = sphi 0, %s245
      %s248 = sphi 0, %s247
      %s262 = sphi 0, %s248
      %s266 = sphi 0, %s266
      %s268 = sphi 0, %s266
      %s269 = sphi 0, %s268
      %s283 = sphi 0, %s269
      %s287 = sphi 0, %s287
      %s289 = sphi 0, %s287
      %s290 = sphi 0, %s289
      %s304 = sphi 0, %s290
      %s310 = sphi 0, %s312
      %s313 = sphi 0, %s310
      %s314 = sphi 0, %s313
      %s330 = sphi 0, %s314
    $region4: #{transformer_layer.1} parent=1 // loop_header_branch
      %25 = sbr.rel (%p23) target = $region8
    $region5: #{transformer_layer.1} parent=1 // loop_body
      %s27 = ssub.s32 %s22, 1
      %s28 = ssub.s32 %s22, 2
      %s29 = sadd.s32 %s22, 1
      %s30 = ssub.s32 %s22, %s29
      %p31 = scmp.eq.s32.totalorder %s30, 0
      %s33 = sadd.s32 %s32, 1
      %s34 = scalar_select %p31, %s32, %s33
      %p37 = pneg %p31
      %p38 = scmp.eq.s32.totalorder %s22, 1
      %p39 = por %p37, %p38
      %p40 = scmp.ne.s32.totalorder %s32, %s35
      %p41 = scmp.eq.s32.totalorder %s22, 0
      %p42 = por %p40, %p41
      %p43 = scmp.ne.s32.totalorder %s32, %s35
      %p44 = scmp.eq.s32.totalorder %s27, 1
      %p45 = por %p43, %p44
      %p46 = scmp.ne.s32.totalorder %s35, %s36
      %p47 = scmp.eq.s32.totalorder %s27, 0
      %p48 = por %p46, %p47
      %p49 = scmp.ne.s32.totalorder %s35, %s36
      %p50 = scmp.eq.s32.totalorder %s28, 1
      %p51 = por %p49, %p50
      %p53 = scmp.ne.s32.totalorder %s36, %s52
      %p54 = scmp.eq.s32.totalorder %s28, 0
      %p55 = por %p53, %p54
      %s57 = sadd.s32 %s56, 1
      %p60 = scmp.eq.s32.totalorder %s22, 1
      %p61 = scmp.ne.s32.totalorder %s56, %s58
      %p62 = scmp.eq.s32.totalorder %s22, 0
      %p63 = por %p61, %p62
      %p64 = scmp.ne.s32.totalorder %s56, %s58
      %p65 = scmp.eq.s32.totalorder %s27, 1
      %p66 = por %p64, %p65
      %p67 = scmp.ne.s32.totalorder %s58, %s59
      %p68 = scmp.eq.s32.totalorder %s27, 0
      %p69 = por %p67, %p68
      %p70 = scmp.ne.s32.totalorder %s58, %s59
      %p71 = scmp.eq.s32.totalorder %s28, 1
      %p72 = por %p70, %p71
      %p74 = scmp.ne.s32.totalorder %s59, %s73
      %p75 = scmp.eq.s32.totalorder %s28, 0
      %p76 = por %p74, %p75
      %s78 = sadd.s32 %s77, 1
      %p81 = scmp.eq.s32.totalorder %s22, 1
      %p82 = scmp.ne.s32.totalorder %s77, %s79
      %p83 = scmp.eq.s32.totalorder %s22, 0
      %p84 = por %p82, %p83
      %p85 = scmp.ne.s32.totalorder %s77, %s79
      %p86 = scmp.eq.s32.totalorder %s27, 1
      %p87 = por %p85, %p86
      %p88 = scmp.ne.s32.totalorder %s79, %s80
      %p89 = scmp.eq.s32.totalorder %s27, 0
      %p90 = por %p88, %p89
      %p91 = scmp.ne.s32.totalorder %s79, %s80
      %p92 = scmp.eq.s32.totalorder %s28, 1
      %p93 = por %p91, %p92
      %p95 = scmp.ne.s32.totalorder %s80, %s94
      %p96 = scmp.eq.s32.totalorder %s28, 0
      %p97 = por %p95, %p96
      %s99 = sadd.s32 %s98, 1
      %p102 = scmp.eq.s32.totalorder %s22, 1
      %p103 = scmp.ne.s32.totalorder %s98, %s100
      %p104 = scmp.eq.s32.totalorder %s22, 0
      %p105 = por %p103, %p104
      %p106 = scmp.ne.s32.totalorder %s98, %s100
      %p107 = scmp.eq.s32.totalorder %s27, 1
      %p108 = por %p106, %p107
      %p109 = scmp.ne.s32.totalorder %s100, %s101
      %p110 = scmp.eq.s32.totalorder %s27, 0
      %p111 = por %p109, %p110
      %p112 = scmp.ne.s32.totalorder %s100, %s101
      %p113 = scmp.eq.s32.totalorder %s28, 1
      %p114 = por %p112, %p113
      %p116 = scmp.ne.s32.totalorder %s101, %s115
      %p117 = scmp.eq.s32.totalorder %s28, 0
      %p118 = por %p116, %p117
      %s120 = sadd.s32 %s119, 1
      %p123 = scmp.eq.s32.totalorder %s22, 1
      %p124 = scmp.ne.s32.totalorder %s119, %s121
      %p125 = scmp.eq.s32.totalorder %s22, 0
      %p126 = por %p124, %p125
      %p127 = scmp.ne.s32.totalorder %s119, %s121
      %p128 = scmp.eq.s32.totalorder %s27, 1
      %p129 = por %p127, %p128
      %p130 = scmp.ne.s32.totalorder %s121, %s122
      %p131 = scmp.eq.s32.totalorder %s27, 0
      %p132 = por %p130, %p131
      %p133 = scmp.ne.s32.totalorder %s121, %s122
      %p134 = scmp.eq.s32.totalorder %s28, 1
      %p135 = por %p133, %p134
      %p137 = scmp.ne.s32.totalorder %s122, %s136
      %p138 = scmp.eq.s32.totalorder %s28, 0
      %p139 = por %p137, %p138
      %s141 = sadd.s32 %s140, 1
      %p144 = scmp.eq.s32.totalorder %s22, 1
      %p145 = scmp.ne.s32.totalorder %s140, %s142
      %p146 = scmp.eq.s32.totalorder %s22, 0
      %p147 = por %p145, %p146
      %p148 = scmp.ne.s32.totalorder %s140, %s142
      %p149 = scmp.eq.s32.totalorder %s27, 1
      %p150 = por %p148, %p149
      %p151 = scmp.ne.s32.totalorder %s142, %s143
      %p152 = scmp.eq.s32.totalorder %s27, 0
      %p153 = por %p151, %p152
      %p154 = scmp.ne.s32.totalorder %s142, %s143
      %p155 = scmp.eq.s32.totalorder %s28, 1
      %p156 = por %p154, %p155
      %p158 = scmp.ne.s32.totalorder %s143, %s157
      %p159 = scmp.eq.s32.totalorder %s28, 0
      %p160 = por %p158, %p159
      %s162 = sadd.s32 %s161, 1
      %p165 = scmp.eq.s32.totalorder %s22, 1
      %p166 = scmp.ne.s32.totalorder %s161, %s163
      %p167 = scmp.eq.s32.totalorder %s22, 0
      %p168 = por %p166, %p167
      %p169 = scmp.ne.s32.totalorder %s161, %s163
      %p170 = scmp.eq.s32.totalorder %s27, 1
      %p171 = por %p169, %p170
      %p172 = scmp.ne.s32.totalorder %s163, %s164
      %p173 = scmp.eq.s32.totalorder %s27, 0
      %p174 = por %p172, %p173
      %p175 = scmp.ne.s32.totalorder %s163, %s164
      %p176 = scmp.eq.s32.totalorder %s28, 1
      %p177 = por %p175, %p176
      %p179 = scmp.ne.s32.totalorder %s164, %s178
      %p180 = scmp.eq.s32.totalorder %s28, 0
      %p181 = por %p179, %p180
      %s183 = sadd.s32 %s182, 1
      %p186 = scmp.eq.s32.totalorder %s22, 1
      %p187 = scmp.ne.s32.totalorder %s182, %s184
      %p188 = scmp.eq.s32.totalorder %s22, 0
      %p189 = por %p187, %p188
      %p190 = scmp.ne.s32.totalorder %s182, %s184
      %p191 = scmp.eq.s32.totalorder %s27, 1
      %p192 = por %p190, %p191
      %p193 = scmp.ne.s32.totalorder %s184, %s185
      %p194 = scmp.eq.s32.totalorder %s27, 0
      %p195 = por %p193, %p194
      %p196 = scmp.ne.s32.totalorder %s184, %s185
      %p197 = scmp.eq.s32.totalorder %s28, 1
      %p198 = por %p196, %p197
      %p200 = scmp.ne.s32.totalorder %s185, %s199
      %p201 = scmp.eq.s32.totalorder %s28, 0
      %p202 = por %p200, %p201
      %s204 = sadd.s32 %s203, 1
      %p207 = scmp.eq.s32.totalorder %s22, 1
      %p208 = scmp.ne.s32.totalorder %s203, %s205
      %p209 = scmp.eq.s32.totalorder %s22, 0
      %p210 = por %p208, %p209
      %p211 = scmp.ne.s32.totalorder %s203, %s205
      %p212 = scmp.eq.s32.totalorder %s27, 1
      %p213 = por %p211, %p212
      %p214 = scmp.ne.s32.totalorder %s205, %s206
      %p215 = scmp.eq.s32.totalorder %s27, 0
      %p216 = por %p214, %p215
      %p217 = scmp.ne.s32.totalorder %s205, %s206
      %p218 = scmp.eq.s32.totalorder %s28, 1
      %p219 = por %p217, %p218
      %p221 = scmp.ne.s32.totalorder %s206, %s220
      %p222 = scmp.eq.s32.totalorder %s28, 0
      %p223 = por %p221, %p222
      %s225 = sadd.s32 %s224, 1
      %p228 = scmp.eq.s32.totalorder %s22, 1
      %p229 = scmp.ne.s32.totalorder %s224, %s226
      %p230 = scmp.eq.s32.totalorder %s22, 0
      %p231 = por %p229, %p230
      %p232 = scmp.ne.s32.totalorder %s224, %s226
      %p233 = scmp.eq.s32.totalorder %s27, 1
      %p234 = por %p232, %p233
      %p235 = scmp.ne.s32.totalorder %s226, %s227
      %p236 = scmp.eq.s32.totalorder %s27, 0
      %p237 = por %p235, %p236
      %p238 = scmp.ne.s32.totalorder %s226, %s227
      %p239 = scmp.eq.s32.totalorder %s28, 1
      %p240 = por %p238, %p239
      %p242 = scmp.ne.s32.totalorder %s227, %s241
      %p243 = scmp.eq.s32.totalorder %s28, 0
      %p244 = por %p242, %p243
      %s246 = sadd.s32 %s245, 1
      %p249 = scmp.eq.s32.totalorder %s22, 1
      %p250 = scmp.ne.s32.totalorder %s245, %s247
      %p251 = scmp.eq.s32.totalorder %s22, 0
      %p252 = por %p250, %p251
      %p253 = scmp.ne.s32.totalorder %s245, %s247
      %p254 = scmp.eq.s32.totalorder %s27, 1
      %p255 = por %p253, %p254
      %p256 = scmp.ne.s32.totalorder %s247, %s248
      %p257 = scmp.eq.s32.totalorder %s27, 0
      %p258 = por %p256, %p257
      %p259 = scmp.ne.s32.totalorder %s247, %s248
      %p260 = scmp.eq.s32.totalorder %s28, 1
      %p261 = por %p259, %p260
      %p263 = scmp.ne.s32.totalorder %s248, %s262
      %p264 = scmp.eq.s32.totalorder %s28, 0
      %p265 = por %p263, %p264
      %s267 = sadd.s32 %s266, 1
      %p270 = scmp.eq.s32.totalorder %s22, 1
      %p271 = scmp.ne.s32.totalorder %s266, %s268
      %p272 = scmp.eq.s32.totalorder %s22, 0
      %p273 = por %p271, %p272
      %p274 = scmp.ne.s32.totalorder %s266, %s268
      %p275 = scmp.eq.s32.totalorder %s27, 1
      %p276 = por %p274, %p275
      %p277 = scmp.ne.s32.totalorder %s268, %s269
      %p278 = scmp.eq.s32.totalorder %s27, 0
      %p279 = por %p277, %p278
      %p280 = scmp.ne.s32.totalorder %s268, %s269
      %p281 = scmp.eq.s32.totalorder %s28, 1
      %p282 = por %p280, %p281
      %p284 = scmp.ne.s32.totalorder %s269, %s283
      %p285 = scmp.eq.s32.totalorder %s28, 0
      %p286 = por %p284, %p285
      %s288 = sadd.s32 %s287, 1
      %p291 = scmp.eq.s32.totalorder %s22, 1
      %p292 = scmp.ne.s32.totalorder %s287, %s289
      %p293 = scmp.eq.s32.totalorder %s22, 0
      %p294 = por %p292, %p293
      %p295 = scmp.ne.s32.totalorder %s287, %s289
      %p296 = scmp.eq.s32.totalorder %s27, 1
      %p297 = por %p295, %p296
      %p298 = scmp.ne.s32.totalorder %s289, %s290
      %p299 = scmp.eq.s32.totalorder %s27, 0
      %p300 = por %p298, %p299
      %p301 = scmp.ne.s32.totalorder %s289, %s290
      %p302 = scmp.eq.s32.totalorder %s28, 1
      %p303 = por %p301, %p302
      %p305 = scmp.ne.s32.totalorder %s290, %s304
      %p306 = scmp.eq.s32.totalorder %s28, 0
      %p307 = por %p305, %p306
      %s308 = ssub.s32 %s22, %s29
      %p309 = scmp.eq.s32.totalorder %s308, 0
      %s311 = sadd.s32 %s310, 1
      %s312 = scalar_select %p309, %s310, %s311
      %p315 = pneg %p309
      %p316 = scmp.eq.s32.totalorder %s22, 1
      %p317 = por %p315, %p316
      %p318 = scmp.ne.s32.totalorder %s310, %s313
      %p319 = scmp.eq.s32.totalorder %s22, 0
      %p320 = por %p318, %p319
      %p321 = scmp.ne.s32.totalorder %s310, %s313
      %p322 = scmp.eq.s32.totalorder %s27, 1
      %p323 = por %p321, %p322
      %p324 = scmp.ne.s32.totalorder %s313, %s314
      %p325 = scmp.eq.s32.totalorder %s27, 0
      %p326 = por %p324, %p325
      %p327 = scmp.ne.s32.totalorder %s313, %s314
      %p328 = scmp.eq.s32.totalorder %s28, 1
      %p329 = por %p327, %p328
      %p331 = scmp.ne.s32.totalorder %s314, %s330
      %p332 = scmp.eq.s32.totalorder %s28, 0
      %p333 = por %p331, %p332
      %p334 = scmp.le.s32.totalorder 1, %s22
      %p335 = scmp.lt.s32.totalorder %s22, 3
      %p336 = pnand %p334, %p335
      %p337 = pneg %p336
      // Predicated region
      $region9: #{transformer_layer.1} parent=5 // pred_check
        _
      $region10: #{transformer_layer.1} parent=5 // pred_check_branch
        %339 = sbr.rel (%p336) target = $region12
      $region11: #{transformer_layer.1} parent=5 // pred_region
        %s340 = ssub.s32 %s22, 1
        // Predicated region
        $region13: #{transformer_layer.1} parent=11 // pred_check
          %p341 = pneg %p69
        $region14: #{transformer_layer.1} parent=11 // pred_check_branch
          %343 = sbr.rel (%p341) target = $region16
        $region15: #{transformer_layer.1} parent=11 // pred_region
          _
        $region16: #{transformer_layer.1} parent=11 // pred_fallthru
          _
        // Predicated region
        $region17: #{transformer_layer.1} parent=11 // pred_check
          %p344 = pneg %p90
        $region18: #{transformer_layer.1} parent=11 // pred_check_branch
          %346 = sbr.rel (%p344) target = $region20
        $region19: #{transformer_layer.1} parent=11 // pred_region
          _
        $region20: #{transformer_layer.1} parent=11 // pred_fallthru
          _
        // Predicated region
        $region21: #{transformer_layer.1} parent=11 // pred_check
          %p347 = pneg %p111
        $region22: #{transformer_layer.1} parent=11 // pred_check_branch
          %349 = sbr.rel (%p347) target = $region24
        $region23: #{transformer_layer.1} parent=11 // pred_region
          %s351 = ssub.s32 6144, 6144
          %352 = vsyncadd [#allocation3], %s351
          %s353 = sshll.u32 [#allocation2], 4
          %s354 = int_to_ptr.vmem [resolvable:$true] %s353
          %359 = dma.hbm_to_vmem [thread:$0]  %s3, 6144, %s354, [#allocation3], 384, 384, 24
        $region24: #{transformer_layer.1} parent=11 // pred_fallthru
          _
        // Predicated region
        $region25: #{transformer_layer.1} parent=11 // pred_check
          %p360 = pneg %p132
        $region26: #{transformer_layer.1} parent=11 // pred_check_branch
          %362 = sbr.rel (%p360) target = $region28
        $region27: #{transformer_layer.1} parent=11 // pred_region
          _
        $region28: #{transformer_layer.1} parent=11 // pred_fallthru
          _
        // Predicated region
        $region29: #{transformer_layer.1} parent=11 // pred_check
          %p363 = pneg %p153
        $region30: #{transformer_layer.1} parent=11 // pred_check_branch
          %365 = sbr.rel (%p363) target = $region32
        $region31: #{transformer_layer.1} parent=11 // pred_region
          %s367 = ssub.s32 2048, 2048
          %368 = vsyncadd [#allocation5], %s367
          %s369 = sshll.u32 [#allocation4], 4
          %s370 = int_to_ptr.vmem [resolvable:$true] %s369
          %375 = dma.hbm_to_vmem [thread:$0]  %s5, 2048, %s370, [#allocation5], 128, 128, 8
        $region32: #{transformer_layer.1} parent=11 // pred_fallthru
          _
        // Predicated region
        $region33: #{transformer_layer.1} parent=11 // pred_check
          %p376 = pneg %p174
        $region34: #{transformer_layer.1} parent=11 // pred_check_branch
          %378 = sbr.rel (%p376) target = $region36
        $region35: #{transformer_layer.1} parent=11 // pred_region
          _
        $region36: #{transformer_layer.1} parent=11 // pred_fallthru
          _
        // Predicated region
        $region37: #{transformer_layer.1} parent=11 // pred_check
          %p379 = pneg %p195
        $region38: #{transformer_layer.1} parent=11 // pred_check_branch
          %381 = sbr.rel (%p379) target = $region40
        $region39: #{transformer_layer.1} parent=11 // pred_region
          _
        $region40: #{transformer_layer.1} parent=11 // pred_fallthru
          _
        // Predicated region
        $region41: #{transformer_layer.1} parent=11 // pred_check
          %p382 = pneg %p216
        $region42: #{transformer_layer.1} parent=11 // pred_check_branch
          %384 = sbr.rel (%p382) target = $region44
        $region43: #{transformer_layer.1} parent=11 // pred_region
          _
        $region44: #{transformer_layer.1} parent=11 // pred_fallthru
          _
        // Predicated region
        $region45: #{transformer_layer.1} parent=11 // pred_check
          %p385 = pneg %p237
        $region46: #{transformer_layer.1} parent=11 // pred_check_branch
          %387 = sbr.rel (%p385) target = $region48
        $region47: #{transformer_layer.1} parent=11 // pred_region
          %s389 = ssub.s32 4096, 4096
          %390 = vsyncadd [#allocation5], %s389
          %s391 = sshll.u32 [#allocation6], 4
          %s392 = int_to_ptr.vmem [resolvable:$true] %s391
          %397 = dma.hbm_to_vmem [thread:$0]  %s9, 4096, %s392, [#allocation5], 256, 256, 16
        $region48: #{transformer_layer.1} parent=11 // pred_fallthru
          _
        // Predicated region
        $region49: #{transformer_layer.1} parent=11 // pred_check
          %p398 = pneg %p258
        $region50: #{transformer_layer.1} parent=11 // pred_check_branch
          %400 = sbr.rel (%p398) target = $region52
        $region51: #{transformer_layer.1} parent=11 // pred_region
          _
        $region52: #{transformer_layer.1} parent=11 // pred_fallthru
          _
        // Predicated region
        $region53: #{transformer_layer.1} parent=11 // pred_check
          %p401 = pneg %p279
        $region54: #{transformer_layer.1} parent=11 // pred_check_branch
          %403 = sbr.rel (%p401) target = $region56
        $region55: #{transformer_layer.1} parent=11 // pred_region
          %s405 = ssub.s32 4096, 4096
          %406 = vsyncadd [#allocation8], %s405
          %s407 = sshll.u32 [#allocation7], 4
          %s408 = int_to_ptr.vmem [resolvable:$true] %s407
          %413 = dma.hbm_to_vmem [thread:$0]  %s11, 4096, %s408, [#allocation8], 128, 128, 8
        $region56: #{transformer_layer.1} parent=11 // pred_fallthru
          _
        // Predicated region
        $region57: #{transformer_layer.1} parent=11 // pred_check
          %p414 = pneg %p300
        $region58: #{transformer_layer.1} parent=11 // pred_check_branch
          %416 = sbr.rel (%p414) target = $region60
        $region59: #{transformer_layer.1} parent=11 // pred_region
          _
        $region60: #{transformer_layer.1} parent=11 // pred_fallthru
          _
      $region12: #{transformer_layer.1} parent=5 // pred_fallthru
        _
      %p417 = scmp.lt.s32.totalorder %s22, 2
      // Predicated region
      $region61: #{transformer_layer.1} parent=5 // pred_check
        %p418 = pneg %p417
      $region62: #{transformer_layer.1} parent=5 // pred_check_branch
        %420 = sbr.rel (%p418) target = $region64
      $region63: #{transformer_layer.1} parent=5 // pred_region
        // Predicated region
        $region65: #{transformer_layer.1} parent=63 // pred_check
          %p421 = pneg %p42
        $region66: #{transformer_layer.1} parent=63 // pred_check_branch
          %423 = sbr.rel (%p421) target = $region68
        $region67: #{transformer_layer.1} parent=63 // pred_region
          %s424 = smul.u32 2, %s22
          %p425 = scmp.lt.s32.totalorder %s424, 3
          %s426 = scalar_select %p425, %s424, 3
          %s427 = smul.addr %s426, 8
          %s428 = scalar_lea.vmem %s0, %s427
          %s429 = smul.u32 2, %s22
        $region68: #{transformer_layer.1} parent=63 // pred_fallthru
          _
      $region64: #{transformer_layer.1} parent=5 // pred_fallthru
        _
      %p430 = scmp.le.s32.totalorder 1, %s22
      %p431 = scmp.lt.s32.totalorder %s22, 3
      %p432 = pnand %p430, %p431
      %p433 = pneg %p432
      // Predicated region
      $region69: #{transformer_layer.1} parent=5 // pred_check
        _
      $region70: #{transformer_layer.1} parent=5 // pred_check_branch
        %435 = sbr.rel (%p432) target = $region72
      $region71: #{transformer_layer.1} parent=5 // pred_region
        %s436 = ssub.s32 %s22, 1
        // Predicated region
        $region73: #{transformer_layer.1} parent=71 // pred_check
          %p437 = pneg %p111
        $region74: #{transformer_layer.1} parent=71 // pred_check_branch
          %439 = sbr.rel (%p437) target = $region76
        $region75: #{transformer_layer.1} parent=71 // pred_region
          %440 = dma.done [#allocation3], 6144
        $region76: #{transformer_layer.1} parent=71 // pred_fallthru
          _
        // Predicated region
        $region77: #{transformer_layer.1} parent=71 // pred_check
          %p441 = pneg %p153
        $region78: #{transformer_layer.1} parent=71 // pred_check_branch
          %443 = sbr.rel (%p441) target = $region80
        $region79: #{transformer_layer.1} parent=71 // pred_region
          %444 = dma.done [#allocation5], 2048
        $region80: #{transformer_layer.1} parent=71 // pred_fallthru
          _
        // Predicated region
        $region81: #{transformer_layer.1} parent=71 // pred_check
          %p445 = pneg %p237
        $region82: #{transformer_layer.1} parent=71 // pred_check_branch
          %447 = sbr.rel (%p445) target = $region84
        $region83: #{transformer_layer.1} parent=71 // pred_region
          %448 = dma.done [#allocation5], 4096
        $region84: #{transformer_layer.1} parent=71 // pred_fallthru
          _
        // Predicated region
        $region85: #{transformer_layer.1} parent=71 // pred_check
          %p449 = pneg %p279
        $region86: #{transformer_layer.1} parent=71 // pred_check_branch
          %451 = sbr.rel (%p449) target = $region88
        $region87: #{transformer_layer.1} parent=71 // pred_region
          %452 = dma.done [#allocation8], 4096
        $region88: #{transformer_layer.1} parent=71 // pred_fallthru
          _
        %s453 = smul.u32 2, %s27
        %p454 = scmp.lt.s32.totalorder %s453, 3
        %s455 = scalar_select %p454, %s453, 3
        %s456 = smul.addr %s455, 8
        %s457 = scalar_lea.vmem %s0, %s456
        %p458 = pneg %p48
        %p459 = pneg %p45
        %p460 = pneg %p69
        %p461 = pneg %p66
        %p462 = pneg %p90
        %p463 = pneg %p87
        %p464 = pneg %p111
        %p465 = pneg %p108
        %p466 = pneg %p132
        %p467 = pneg %p129
        %p468 = pneg %p153
        %p469 = pneg %p150
        %p470 = pneg %p174
        %p471 = pneg %p171
        %p472 = pneg %p195
        %p473 = pneg %p192
        %p474 = pneg %p216
        %p475 = pneg %p213
        %p476 = pneg %p237
        %p477 = pneg %p234
        %p478 = pneg %p258
        %p479 = pneg %p255
        %p480 = pneg %p279
        %p481 = pneg %p276
        %p482 = pneg %p300
        %p483 = pneg %p297
        %p484 = pneg %p326
        %p485 = pneg %p323
        %s486 = smul.u32 2, %s27
        %p487 = scmp.lt.s32.totalorder %s486, 3
        %s488 = scalar_select %p487, %s486, 3
        %s489 = smul.addr %s488, 8
        %s490 = scalar_lea.vmem %s13, %s489
        %s491 = smul.u32 2, %s27
        %p492 = scmp.lt.s32.totalorder %s491, 3
        %s493 = scalar_select %p492, %s491, 3
        %s494 = smul.addr %s493, 8
        %s495 = scalar_lea.vmem %s0, %s494
        %s496 = smul.u32 2, %s27
        %s497 = smul.u32 2, %s27
        %p498 = scmp.lt.s32.totalorder %s497, 3
        %s499 = scalar_select %p498, %s497, 3
        %s500 = smul.addr %s499, 8
        %s501 = scalar_lea.vmem %s13, %s500
        %s502 = smul.u32 2, %s27
        %v503 = vld [vmem:[%s495] sm:$0xff]
        %v504 = vld [vmem:[%s495 + $0x8] sm:$0xff]
        %v505 = vld [vmem:[%s1] sm:$0x1]
        %v506 = vld [vmem:[%s2] sm:$0x1]
        %507 = vadd.xlane.f32.xlu0 %v503
        %v508 = vpop.xlane.xlu0 %507
        %509 = vadd.xlane.f32.xlu0 %v504
        %v510 = vpop.xlane.xlu0 %509
        %v511 = vrcp.pop 128.0
        %v512 = vmul.f32 %v508, %v511
        %v513 = vmul.f32 %v510, %v511
        %v514 = vsub.f32 %v503, %v512
        %v515 = vsub.f32 %v504, %v513
        %v516 = vmul.f32 %v514, %v514
        %v517 = vmul.f32 %v515, %v515
        %518 = vadd.xlane.f32.xlu0 %v516
        %v519 = vpop.xlane.xlu0 %518
        %520 = vadd.xlane.f32.xlu0 %v517
        %v521 = vpop.xlane.xlu0 %520
        %v522 = vmul.f32 %v519, %v511
        %v523 = vmul.f32 %v521, %v511
        %v524 = vadd.f32 %v522, 1e-05
        %v525 = vadd.f32 %v523, 1e-05
        %v526 = vrsqrt.pop %v524
        %v527 = vrsqrt.pop %v525
        %v528 = vmul.f32 %v514, %v526
        %v529 = vmul.f32 %v515, %v527
        %v531 = vlaneseq
        %v532 = vshrl.u32 %v531, 7
        %v533 = vsub.s32 0, %v532
        %v534 = vrot.slane %v505, %v533
        %v536 = vmul.f32 %v528, %v534
        %v537 = vmul.f32 %v529, %v534
        %v539 = vlaneseq
        %v540 = vshrl.u32 %v539, 7
        %v541 = vsub.s32 0, %v540
        %v542 = vrot.slane %v506, %v541
        %v544 = vadd.f32 %v536, %v542
        %v545 = vadd.f32 %v537, %v542
        %v546 = vld [vmem:[#allocation2] sm:$0xff]
        %v547 = vld [vmem:[#allocation2 + $0x8] sm:$0xff]
        %v548 = vld [vmem:[#allocation2 + $0x10] sm:$0xff]
        %v549 = vld [vmem:[#allocation2 + $0x18] sm:$0xff]
        %v550 = vld [vmem:[#allocation2 + $0x20] sm:$0xff]
        %v551 = vld [vmem:[#allocation2 + $0x28] sm:$0xff]
        %v552 = vld [vmem:[#allocation2 + $0x30] sm:$0xff]
        %v553 = vld [vmem:[#allocation2 + $0x38] sm:$0xff]
        %v554 = vld [vmem:[#allocation2 + $0x40] sm:$0xff]
        %v555 = vld [vmem:[#allocation2 + $0x48] sm:$0xff]
        %v556 = vld [vmem:[#allocation2 + $0x50] sm:$0xff]
        %v557 = vld [vmem:[#allocation2 + $0x58] sm:$0xff]
        %v558 = vld [vmem:[#allocation2 + $0x60] sm:$0xff]
        %v559 = vld [vmem:[#allocation2 + $0x68] sm:$0xff]
        %v560 = vld [vmem:[#allocation2 + $0x70] sm:$0xff]
        %v561 = vld [vmem:[#allocation2 + $0x78] sm:$0xff]
        %v562 = vld [vmem:[#allocation2 + $0x80] sm:$0xff]
        %v563 = vld [vmem:[#allocation2 + $0x88] sm:$0xff]
        %v564 = vld [vmem:[#allocation2 + $0x90] sm:$0xff]
        %v565 = vld [vmem:[#allocation2 + $0x98] sm:$0xff]
        %v566 = vld [vmem:[#allocation2 + $0xa0] sm:$0xff]
        %v567 = vld [vmem:[#allocation2 + $0xa8] sm:$0xff]
        %v568 = vld [vmem:[#allocation2 + $0xb0] sm:$0xff]
        %v569 = vld [vmem:[#allocation2 + $0xb8] sm:$0xff]
        %v570 = vld [vmem:[#allocation2 + $0xc0] sm:$0xff]
        %v571 = vld [vmem:[#allocation2 + $0xc8] sm:$0xff]
        %v572 = vld [vmem:[#allocation2 + $0xd0] sm:$0xff]
        %v573 = vld [vmem:[#allocation2 + $0xd8] sm:$0xff]
        %v574 = vld [vmem:[#allocation2 + $0xe0] sm:$0xff]
        %v575 = vld [vmem:[#allocation2 + $0xe8] sm:$0xff]
        %v576 = vld [vmem:[#allocation2 + $0xf0] sm:$0xff]
        %v577 = vld [vmem:[#allocation2 + $0xf8] sm:$0xff]
        %v578 = vld [vmem:[#allocation2 + $0x100] sm:$0xff]
        %v579 = vld [vmem:[#allocation2 + $0x108] sm:$0xff]
        %v580 = vld [vmem:[#allocation2 + $0x110] sm:$0xff]
        %v581 = vld [vmem:[#allocation2 + $0x118] sm:$0xff]
        %v582 = vld [vmem:[#allocation2 + $0x120] sm:$0xff]
        %v583 = vld [vmem:[#allocation2 + $0x128] sm:$0xff]
        %v584 = vld [vmem:[#allocation2 + $0x130] sm:$0xff]
        %v585 = vld [vmem:[#allocation2 + $0x138] sm:$0xff]
        %v586 = vld [vmem:[#allocation2 + $0x140] sm:$0xff]
        %v587 = vld [vmem:[#allocation2 + $0x148] sm:$0xff]
        %v588 = vld [vmem:[#allocation2 + $0x150] sm:$0xff]
        %v589 = vld [vmem:[#allocation2 + $0x158] sm:$0xff]
        %v590 = vld [vmem:[#allocation2 + $0x160] sm:$0xff]
        %v591 = vld [vmem:[#allocation2 + $0x168] sm:$0xff]
        %v592 = vld [vmem:[#allocation2 + $0x170] sm:$0xff]
        %v593 = vld [vmem:[#allocation2 + $0x178] sm:$0xff]
        %v594 = vld [vmem:[%s4] sm:$0x7]
        %v596 = vlaneseq
        %v597 = vshrl.u32 %v596, 7
        %v598 = vsub.s32 0, %v597
        %v599 = vrot.slane %v594, %v598
        %v600 = vlaneseq
        %v601 = vshrl.u32 %v600, 7
        %v602 = vsub.s32 1, %v601
        %v603 = vrot.slane %v594, %v602
        %v604 = vlaneseq
        %v605 = vshrl.u32 %v604, 7
        %v606 = vsub.s32 2, %v605
        %v607 = vrot.slane %v594, %v606
        %611 = vmatprep.subr.mxu0 %v547
        %612 = vmatpush1.msra.mxu0 %v546
        %613 = vmatprep.subr.mxu0 %v550
        %614 = vmatpush1.msra.mxu0 %v549
        %615 = vmatprep.subr.mxu0 %v553
        %616 = vmatpush1.msra.mxu0 %v552
        %617 = vmatprep.subr.mxu0 %v556
        %618 = vmatpush1.msra.mxu0 %v555
        %619 = vmatprep.subr.mxu0 %v559
        %620 = vmatpush1.msra.mxu0 %v558
        %621 = vmatprep.subr.mxu0 %v562
        %622 = vmatpush1.msra.mxu0 %v561
        %623 = vmatprep.subr.mxu0 %v565
        %624 = vmatpush1.msra.mxu0 %v564
        %625 = vmatprep.subr.mxu0 %v568
        %626 = vmatpush1.msra.mxu0 %v567
        %627 = vmatprep.subr.mxu0 %v571
        %628 = vmatpush1.msra.mxu0 %v570
        %629 = vmatprep.subr.mxu0 %v574
        %630 = vmatpush1.msra.mxu0 %v573
        %631 = vmatprep.subr.mxu0 %v577
        %632 = vmatpush1.msra.mxu0 %v576
        %633 = vmatprep.subr.mxu0 %v580
        %634 = vmatpush1.msra.mxu0 %v579
        %635 = vmatprep.subr.mxu0 %v583
        %636 = vmatpush1.msra.mxu0 %v582
        %637 = vmatprep.subr.mxu0 %v586
        %638 = vmatpush1.msra.mxu0 %v585
        %639 = vmatprep.subr.mxu0 %v589
        %640 = vmatpush1.msra.mxu0 %v588
        %641 = vmatprep.subr.mxu0 %v592
        %642 = vmatpush1.msra.mxu0 %v591
        %643 = vmatprep.subr.mxu0 0.0
        %644 = vmatpush1.msra.mxu0 0.0
        %645 = vmatprep.subr.mxu0 0.0
        %646 = vmatpush1.msra.mxu0 0.0
        %647 = vmatprep.subr.mxu0 0.0
        %648 = vmatpush1.msra.mxu0 0.0
        %649 = vmatprep.subr.mxu0 0.0
        %650 = vmatpush1.msra.mxu0 0.0
        %651 = vmatprep.subr.mxu0 0.0
        %652 = vmatpush1.msra.mxu0 0.0
        %653 = vmatprep.subr.mxu0 0.0
        %654 = vmatpush1.msra.mxu0 0.0
        %655 = vmatprep.subr.mxu0 0.0
        %656 = vmatpush1.msra.mxu0 0.0
        %657 = vmatprep.subr.mxu0 0.0
        %658 = vmatpush1.msra.mxu0 0.0
        %659 = vmatprep.subr.mxu0 0.0
        %660 = vmatpush1.msra.mxu0 0.0
        %661 = vmatprep.subr.mxu0 0.0
        %662 = vmatpush1.msra.mxu0 0.0
        %663 = vmatprep.subr.mxu0 0.0
        %664 = vmatpush1.msra.mxu0 0.0
        %665 = vmatprep.subr.mxu0 0.0
        %666 = vmatpush1.msra.mxu0 0.0
        %667 = vmatprep.subr.mxu0 0.0
        %668 = vmatpush1.msra.mxu0 0.0
        %669 = vmatprep.subr.mxu0 0.0
        %670 = vmatpush1.msra.mxu0 0.0
        %671 = vmatprep.subr.mxu0 0.0
        %672 = vmatpush1.msra.mxu0 0.0
        %673 = vmatprep.subr.mxu0 0.0
        %674 = vmatpush1.msra.mxu0 0.0
        %675 = vmatprep.mubr.f32.mxu0 0.0
        %676 = vmatmul.mubr.f32.gmra.mrb[0].mxu0 %v544
        %v677 = vpop.f32.mrb[0].mxu0
        %v678 = vadd.f32 %v599, %v677
        %v679 = vpop.f32.mrb[0].mxu0
        %v680 = vadd.f32 %v603, %v679
        %681 = vmatprep.mubr.f32.mxu0 0.0
        %682 = vmatmul.mubr.f32.gmra.mrb[0].mxu0 %v545
        %v683 = vpop.f32.mrb[0].mxu0
        %v684 = vadd.f32 %v599, %v683
        %v685 = vpop.f32.mrb[0].mxu0
        %v686 = vadd.f32 %v603, %v685
        %687 = vdwg.mxu0
        %688 = vmatprep.subr.mxu0 0.0
        %689 = vmatpush1.msra.mxu0 %v548
        %690 = vmatprep.subr.mxu0 0.0
        %691 = vmatpush1.msra.mxu0 %v551
        %692 = vmatprep.subr.mxu0 0.0
        %693 = vmatpush1.msra.mxu0 %v554
        %694 = vmatprep.subr.mxu0 0.0
        %695 = vmatpush1.msra.mxu0 %v557
        %696 = vmatprep.subr.mxu0 0.0
        %697 = vmatpush1.msra.mxu0 %v560
        %698 = vmatprep.subr.mxu0 0.0
        %699 = vmatpush1.msra.mxu0 %v563
        %700 = vmatprep.subr.mxu0 0.0
        %701 = vmatpush1.msra.mxu0 %v566
        %702 = vmatprep.subr.mxu0 0.0
        %703 = vmatpush1.msra.mxu0 %v569
        %704 = vmatprep.subr.mxu0 0.0
        %705 = vmatpush1.msra.mxu0 %v572
        %706 = vmatprep.subr.mxu0 0.0
        %707 = vmatpush1.msra.mxu0 %v575
        %708 = vmatprep.subr.mxu0 0.0
        %709 = vmatpush1.msra.mxu0 %v578
        %710 = vmatprep.subr.mxu0 0.0
        %711 = vmatpush1.msra.mxu0 %v581
        %712 = vmatprep.subr.mxu0 0.0
        %713 = vmatpush1.msra.mxu0 %v584
        %714 = vmatprep.subr.mxu0 0.0
        %715 = vmatpush1.msra.mxu0 %v587
        %716 = vmatprep.subr.mxu0 0.0
        %717 = vmatpush1.msra.mxu0 %v590
        %718 = vmatprep.subr.mxu0 0.0
        %719 = vmatpush1.msra.mxu0 %v593
        %720 = vmatprep.subr.mxu0 0.0
        %721 = vmatpush1.msra.mxu0 0.0
        %722 = vmatprep.subr.mxu0 0.0
        %723 = vmatpush1.msra.mxu0 0.0
        %724 = vmatprep.subr.mxu0 0.0
        %725 = vmatpush1.msra.mxu0 0.0
        %726 = vmatprep.subr.mxu0 0.0
        %727 = vmatpush1.msra.mxu0 0.0
        %728 = vmatprep.subr.mxu0 0.0
        %729 = vmatpush1.msra.mxu0 0.0
        %730 = vmatprep.subr.mxu0 0.0
        %731 = vmatpush1.msra.mxu0 0.0
        %732 = vmatprep.subr.mxu0 0.0
        %733 = vmatpush1.msra.mxu0 0.0
        %734 = vmatprep.subr.mxu0 0.0
        %735 = vmatpush1.msra.mxu0 0.0
        %736 = vmatprep.subr.mxu0 0.0
        %737 = vmatpush1.msra.mxu0 0.0
        %738 = vmatprep.subr.mxu0 0.0
        %739 = vmatpush1.msra.mxu0 0.0
        %740 = vmatprep.subr.mxu0 0.0
        %741 = vmatpush1.msra.mxu0 0.0
        %742 = vmatprep.subr.mxu0 0.0
        %743 = vmatpush1.msra.mxu0 0.0
        %744 = vmatprep.subr.mxu0 0.0
        %745 = vmatpush1.msra.mxu0 0.0
        %746 = vmatprep.subr.mxu0 0.0
        %747 = vmatpush1.msra.mxu0 0.0
        %748 = vmatprep.subr.mxu0 0.0
        %749 = vmatpush1.msra.mxu0 0.0
        %750 = vmatprep.subr.mxu0 0.0
        %751 = vmatpush1.msra.mxu0 0.0
        %752 = vmatprep.mubr.f32.mxu0 0.0
        %753 = vmatmul.mubr.f32.gmra.mrb[0].mxu0 %v544
        %v754 = vpop.f32.mrb[0].mxu0
        %v755 = vadd.f32 %v607, %v754
        %v756 = vpop.f32.mrb[0].mxu0
        %757 = vmatprep.mubr.f32.mxu0 0.0
        %758 = vmatmul.mubr.f32.gmra.mrb[0].mxu0 %v545
        %v759 = vpop.f32.mrb[0].mxu0
        %v760 = vadd.f32 %v607, %v759
        %v761 = vpop.f32.mrb[0].mxu0
        %762 = vdwg.mxu0
        %vm763 = vcmask 261120
        %v765 = vsel %vm763, %v678, 0
        %v768 = vsel %vm763, %v684, 0
        %v771 = vsel %vm763, %v680, 0
        %v774 = vsel %vm763, %v686, 0
        %776 = vmatprep.subr.mxu0 0.0
        %777 = vmatpush1.xpose.msra.mxu0 %v771
        %778 = vmatprep.subr.mxu0 0.0
        %779 = vmatpush1.xpose.msra.mxu0 %v774
        %780 = vmatprep.subr.mxu0 0.0
        %781 = vmatpush1.xpose.msra.mxu0 0.0
        %782 = vmatprep.subr.mxu0 0.0
        %783 = vmatpush1.xpose.msra.mxu0 0.0
        %784 = vmatprep.subr.mxu0 0.0
        %785 = vmatpush1.xpose.msra.mxu0 0.0
        %786 = vmatprep.subr.mxu0 0.0
        %787 = vmatpush1.xpose.msra.mxu0 0.0
        %788 = vmatprep.subr.mxu0 0.0
        %789 = vmatpush1.xpose.msra.mxu0 0.0
        %790 = vmatprep.subr.mxu0 0.0
        %791 = vmatpush1.xpose.msra.mxu0 0.0
        %792 = vmatprep.subr.mxu0 0.0
        %793 = vmatpush1.xpose.msra.mxu0 0.0
        %794 = vmatprep.subr.mxu0 0.0
        %795 = vmatpush1.xpose.msra.mxu0 0.0
        %796 = vmatprep.subr.mxu0 0.0
        %797 = vmatpush1.xpose.msra.mxu0 0.0
        %798 = vmatprep.subr.mxu0 0.0
        %799 = vmatpush1.xpose.msra.mxu0 0.0
        %800 = vmatprep.subr.mxu0 0.0
        %801 = vmatpush1.xpose.msra.mxu0 0.0
        %802 = vmatprep.subr.mxu0 0.0
        %803 = vmatpush1.xpose.msra.mxu0 0.0
        %804 = vmatprep.subr.mxu0 0.0
        %805 = vmatpush1.xpose.msra.mxu0 0.0
        %806 = vmatprep.subr.mxu0 0.0
        %807 = vmatpush1.xpose.msra.mxu0 0.0
        %808 = vmatprep.subr.mxu0 0.0
        %809 = vmatpush1.xpose.msra.mxu0 0.0
        %810 = vmatprep.subr.mxu0 0.0
        %811 = vmatpush1.xpose.msra.mxu0 0.0
        %812 = vmatprep.subr.mxu0 0.0
        %813 = vmatpush1.xpose.msra.mxu0 0.0
        %814 = vmatprep.subr.mxu0 0.0
        %815 = vmatpush1.xpose.msra.mxu0 0.0
        %816 = vmatprep.subr.mxu0 0.0
        %817 = vmatpush1.xpose.msra.mxu0 0.0
        %818 = vmatprep.subr.mxu0 0.0
        %819 = vmatpush1.xpose.msra.mxu0 0.0
        %820 = vmatprep.subr.mxu0 0.0
        %821 = vmatpush1.xpose.msra.mxu0 0.0
        %822 = vmatprep.subr.mxu0 0.0
        %823 = vmatpush1.xpose.msra.mxu0 0.0
        %824 = vmatprep.subr.mxu0 0.0
        %825 = vmatpush1.xpose.msra.mxu0 0.0
        %826 = vmatprep.subr.mxu0 0.0
        %827 = vmatpush1.xpose.msra.mxu0 0.0
        %828 = vmatprep.subr.mxu0 0.0
        %829 = vmatpush1.xpose.msra.mxu0 0.0
        %830 = vmatprep.subr.mxu0 0.0
        %831 = vmatpush1.xpose.msra.mxu0 0.0
        %832 = vmatprep.subr.mxu0 0.0
        %833 = vmatpush1.xpose.msra.mxu0 0.0
        %834 = vmatprep.subr.mxu0 0.0
        %835 = vmatpush1.xpose.msra.mxu0 0.0
        %836 = vmatprep.subr.mxu0 0.0
        %837 = vmatpush1.xpose.msra.mxu0 0.0
        %838 = vmatprep.subr.mxu0 0.0
        %839 = vmatpush1.xpose.msra.mxu0 0.0
        %840 = vmatprep.mubr.f32.mxu0 0.0
        %841 = vmatmul.mubr.f32.gmra.mrb[0].mxu0 %v765
        %v842 = vpop.f32.mrb[0].mxu0
        %v843 = vadd.f32 0.0, %v842
        %v844 = vpop.f32.mrb[0].mxu0
        %845 = vmatprep.mubr.f32.mxu0 0.0
        %846 = vmatmul.mubr.f32.gmra.mrb[0].mxu0 %v768
        %v847 = vpop.f32.mrb[0].mxu0
        %v848 = vadd.f32 0.0, %v847
        %v849 = vpop.f32.mrb[0].mxu0
        %850 = vdwg.mxu0
        %v851 = vmul.f32 %v843, 0.17677669
        %v852 = vmul.f32 %v848, 0.17677669
        %vm853 = vcmask 130048
        %v854 = vsel %vm853, %v851, -inf
        %855 = vmax.xlane.f32.xlu0 %v854
        %v856 = vpop.xlane.xlu0 %855
        %v857 = vsel %vm853, %v852, -inf
        %858 = vmax.xlane.f32.xlu0 %v857
        %v859 = vpop.xlane.xlu0 %858
        %v860 = vsub.f32 %v851, %v856
        %v861 = vsub.f32 %v852, %v859
        %v862 = vmul.f32 %v860, 1.442695
        %v863 = vpow.pop %v862
        %v864 = vmul.f32 %v861, 1.442695
        %v865 = vpow.pop %v864
        %v866 = vsel %vm853, %v863, 0.0
        %867 = vadd.xlane.f32.xlu0 %v866
        %v868 = vpop.xlane.xlu0 %867
        %v869 = vsel %vm853, %v865, 0.0
        %870 = vadd.xlane.f32.xlu0 %v869
        %v871 = vpop.xlane.xlu0 %870
        %v872 = vrcp.pop %v868
        %v873 = vrcp.pop %v871
        %v874 = vmul.f32 %v863, %v872
        %v875 = vmul.f32 %v865, %v873
        %v877 = vsel %vm853, %v874, 0
        %v880 = vsel %vm853, %v875, 0
        %882 = vmatprep.subr.mxu0 0.0
        %883 = vmatpush1.msra.mxu0 %v755
        %884 = vmatprep.subr.mxu0 0.0
        %885 = vmatpush1.msra.mxu0 %v760
        %886 = vmatprep.subr.mxu0 0.0
        %887 = vmatpush1.msra.mxu0 0.0
        %888 = vmatprep.subr.mxu0 0.0
        %889 = vmatpush1.msra.mxu0 0.0
        %890 = vmatprep.subr.mxu0 0.0
        %891 = vmatpush1.msra.mxu0 0.0
        %892 = vmatprep.subr.mxu0 0.0
        %893 = vmatpush1.msra.mxu0 0.0
        %894 = vmatprep.subr.mxu0 0.0
        %895 = vmatpush1.msra.mxu0 0.0
        %896 = vmatprep.subr.mxu0 0.0
        %897 = vmatpush1.msra.mxu0 0.0
        %898 = vmatprep.subr.mxu0 0.0
        %899 = vmatpush1.msra.mxu0 0.0
        %900 = vmatprep.subr.mxu0 0.0
        %901 = vmatpush1.msra.mxu0 0.0
        %902 = vmatprep.subr.mxu0 0.0
        %903 = vmatpush1.msra.mxu0 0.0
        %904 = vmatprep.subr.mxu0 0.0
        %905 = vmatpush1.msra.mxu0 0.0
        %906 = vmatprep.subr.mxu0 0.0
        %907 = vmatpush1.msra.mxu0 0.0
        %908 = vmatprep.subr.mxu0 0.0
        %909 = vmatpush1.msra.mxu0 0.0
        %910 = vmatprep.subr.mxu0 0.0
        %911 = vmatpush1.msra.mxu0 0.0
        %912 = vmatprep.subr.mxu0 0.0
        %913 = vmatpush1.msra.mxu0 0.0
        %914 = vmatprep.subr.mxu0 0.0
        %915 = vmatpush1.msra.mxu0 0.0
        %916 = vmatprep.subr.mxu0 0.0
        %917 = vmatpush1.msra.mxu0 0.0
        %918 = vmatprep.subr.mxu0 0.0
        %919 = vmatpush1.msra.mxu0 0.0
        %920 = vmatprep.subr.mxu0 0.0
        %921 = vmatpush1.msra.mxu0 0.0
        %922 = vmatprep.subr.mxu0 0.0
        %923 = vmatpush1.msra.mxu0 0.0
        %924 = vmatprep.subr.mxu0 0.0
        %925 = vmatpush1.msra.mxu0 0.0
        %926 = vmatprep.subr.mxu0 0.0
        %927 = vmatpush1.msra.mxu0 0.0
        %928 = vmatprep.subr.mxu0 0.0
        %929 = vmatpush1.msra.mxu0 0.0
        %930 = vmatprep.subr.mxu0 0.0
        %931 = vmatpush1.msra.mxu0 0.0
        %932 = vmatprep.subr.mxu0 0.0
        %933 = vmatpush1.msra.mxu0 0.0
        %934 = vmatprep.subr.mxu0 0.0
        %935 = vmatpush1.msra.mxu0 0.0
        %936 = vmatprep.subr.mxu0 0.0
        %937 = vmatpush1.msra.mxu0 0.0
        %938 = vmatprep.subr.mxu0 0.0
        %939 = vmatpush1.msra.mxu0 0.0
        %940 = vmatprep.subr.mxu0 0.0
        %941 = vmatpush1.msra.mxu0 0.0
        %942 = vmatprep.subr.mxu0 0.0
        %943 = vmatpush1.msra.mxu0 0.0
        %944 = vmatprep.subr.mxu0 0.0
        %945 = vmatpush1.msra.mxu0 0.0
        %946 = vmatprep.mubr.f32.mxu0 0.0
        %947 = vmatmul.mubr.f32.gmra.mrb[0].mxu0 %v877
        %v948 = vpop.f32.mrb[0].mxu0
        %v949 = vadd.f32 0.0, %v948
        %v950 = vpop.f32.mrb[0].mxu0
        %951 = vmatprep.mubr.f32.mxu0 0.0
        %952 = vmatmul.mubr.f32.gmra.mrb[0].mxu0 %v880
        %v953 = vpop.f32.mrb[0].mxu0
        %v954 = vadd.f32 0.0, %v953
        %v955 = vpop.f32.mrb[0].mxu0
        %956 = vdwg.mxu0
        %957 = vrot.lane.b32.xlu0 %v678, 96
        %v958 = vpop.permute.xlu0 %957
        %959 = vrot.lane.b32.xlu0 %v684, 96
        %v960 = vpop.permute.xlu0 %959
        %961 = vrot.lane.b32.xlu0 %v680, 96
        %v962 = vpop.permute.xlu0 %961
        %963 = vrot.lane.b32.xlu0 %v686, 96
        %v964 = vpop.permute.xlu0 %963
        %v965 = vsel %vm763, %v958, 0
        %v967 = vsel %vm763, %v960, 0
        %v969 = vsel %vm763, %v962, 0
        %v971 = vsel %vm763, %v964, 0
        %973 = vmatprep.subr.mxu0 0.0
        %974 = vmatpush1.xpose.msra.mxu0 %v969
        %975 = vmatprep.subr.mxu0 0.0
        %976 = vmatpush1.xpose.msra.mxu0 %v971
        %977 = vmatprep.subr.mxu0 0.0
        %978 = vmatpush1.xpose.msra.mxu0 0.0
        %979 = vmatprep.subr.mxu0 0.0
        %980 = vmatpush1.xpose.msra.mxu0 0.0
        %981 = vmatprep.subr.mxu0 0.0
        %982 = vmatpush1.xpose.msra.mxu0 0.0
        %983 = vmatprep.subr.mxu0 0.0
        %984 = vmatpush1.xpose.msra.mxu0 0.0
        %985 = vmatprep.subr.mxu0 0.0
        %986 = vmatpush1.xpose.msra.mxu0 0.0
        %987 = vmatprep.subr.mxu0 0.0
        %988 = vmatpush1.xpose.msra.mxu0 0.0
        %989 = vmatprep.subr.mxu0 0.0
        %990 = vmatpush1.xpose.msra.mxu0 0.0
        %991 = vmatprep.subr.mxu0 0.0
        %992 = vmatpush1.xpose.msra.mxu0 0.0
        %993 = vmatprep.subr.mxu0 0.0
        %994 = vmatpush1.xpose.msra.mxu0 0.0
        %995 = vmatprep.subr.mxu0 0.0
        %996 = vmatpush1.xpose.msra.mxu0 0.0
        %997 = vmatprep.subr.mxu0 0.0
        %998 = vmatpush1.xpose.msra.mxu0 0.0
        %999 = vmatprep.subr.mxu0 0.0
        %1000 = vmatpush1.xpose.msra.mxu0 0.0
        %1001 = vmatprep.subr.mxu0 0.0
        %1002 = vmatpush1.xpose.msra.mxu0 0.0
        %1003 = vmatprep.subr.mxu0 0.0
        %1004 = vmatpush1.xpose.msra.mxu0 0.0
        %1005 = vmatprep.subr.mxu0 0.0
        %1006 = vmatpush1.xpose.msra.mxu0 0.0
        %1007 = vmatprep.subr.mxu0 0.0
        %1008 = vmatpush1.xpose.msra.mxu0 0.0
        %1009 = vmatprep.subr.mxu0 0.0
        %1010 = vmatpush1.xpose.msra.mxu0 0.0
        %1011 = vmatprep.subr.mxu0 0.0
        %1012 = vmatpush1.xpose.msra.mxu0 0.0
        %1013 = vmatprep.subr.mxu0 0.0
        %1014 = vmatpush1.xpose.msra.mxu0 0.0
        %1015 = vmatprep.subr.mxu0 0.0
        %1016 = vmatpush1.xpose.msra.mxu0 0.0
        %1017 = vmatprep.subr.mxu0 0.0
        %1018 = vmatpush1.xpose.msra.mxu0 0.0
        %1019 = vmatprep.subr.mxu0 0.0
        %1020 = vmatpush1.xpose.msra.mxu0 0.0
        %1021 = vmatprep.subr.mxu0 0.0
        %1022 = vmatpush1.xpose.msra.mxu0 0.0
        %1023 = vmatprep.subr.mxu0 0.0
        %1024 = vmatpush1.xpose.msra.mxu0 0.0
        %1025 = vmatprep.subr.mxu0 0.0
        %1026 = vmatpush1.xpose.msra.mxu0 0.0
        %1027 = vmatprep.subr.mxu0 0.0
        %1028 = vmatpush1.xpose.msra.mxu0 0.0
        %1029 = vmatprep.subr.mxu0 0.0
        %1030 = vmatpush1.xpose.msra.mxu0 0.0
        %1031 = vmatprep.subr.mxu0 0.0
        %1032 = vmatpush1.xpose.msra.mxu0 0.0
        %1033 = vmatprep.subr.mxu0 0.0
        %1034 = vmatpush1.xpose.msra.mxu0 0.0
        %1035 = vmatprep.subr.mxu0 0.0
        %1036 = vmatpush1.xpose.msra.mxu0 0.0
        %1037 = vmatprep.mubr.f32.mxu0 0.0
        %1038 = vmatmul.mubr.f32.gmra.mrb[0].mxu0 %v965
        %v1039 = vpop.f32.mrb[0].mxu0
        %v1040 = vadd.f32 0.0, %v1039
        %v1041 = vpop.f32.mrb[0].mxu0
        %1042 = vmatprep.mubr.f32.mxu0 0.0
        %1043 = vmatmul.mubr.f32.gmra.mrb[0].mxu0 %v967
        %v1044 = vpop.f32.mrb[0].mxu0
        %v1045 = vadd.f32 0.0, %v1044
        %v1046 = vpop.f32.mrb[0].mxu0
        %1047 = vdwg.mxu0
        %v1048 = vmul.f32 %v1040, 0.17677669
        %v1049 = vmul.f32 %v1045, 0.17677669
        %v1050 = vsel %vm853, %v1048, -inf
        %1051 = vmax.xlane.f32.xlu0 %v1050
        %v1052 = vpop.xlane.xlu0 %1051
        %v1053 = vsel %vm853, %v1049, -inf
        %1054 = vmax.xlane.f32.xlu0 %v1053
        %v1055 = vpop.xlane.xlu0 %1054
        %v1056 = vsub.f32 %v1048, %v1052
        %v1057 = vsub.f32 %v1049, %v1055
        %v1058 = vmul.f32 %v1056, 1.442695
        %v1059 = vpow.pop %v1058
        %v1060 = vmul.f32 %v1057, 1.442695
        %v1061 = vpow.pop %v1060
        %v1062 = vsel %vm853, %v1059, 0.0
        %1063 = vadd.xlane.f32.xlu0 %v1062
        %v1064 = vpop.xlane.xlu0 %1063
        %v1065 = vsel %vm853, %v1061, 0.0
        %1066 = vadd.xlane.f32.xlu0 %v1065
        %v1067 = vpop.xlane.xlu0 %1066
        %v1068 = vrcp.pop %v1064
        %v1069 = vrcp.pop %v1067
        %v1070 = vmul.f32 %v1059, %v1068
        %v1071 = vmul.f32 %v1061, %v1069
        %1074 = vrot.lane.b32.xlu0 %v755, 96
        %v1075 = vpop.permute.xlu0 %1074
        %1076 = vrot.lane.b32.xlu0 %v760, 96
        %v1077 = vpop.permute.xlu0 %1076
        %v1081 = vsel %vm853, %v1070, 0
        %v1084 = vsel %vm853, %v1071, 0
        %1086 = vmatprep.subr.mxu0 0.0
        %1087 = vmatpush1.msra.mxu0 %v1075
        %1088 = vmatprep.subr.mxu0 0.0
        %1089 = vmatpush1.msra.mxu0 %v1077
        %1090 = vmatprep.subr.mxu0 0.0
        %1091 = vmatpush1.msra.mxu0 0.0
        %1092 = vmatprep.subr.mxu0 0.0
        %1093 = vmatpush1.msra.mxu0 0.0
        %1094 = vmatprep.subr.mxu0 0.0
        %1095 = vmatpush1.msra.mxu0 0.0
        %1096 = vmatprep.subr.mxu0 0.0
        %1097 = vmatpush1.msra.mxu0 0.0
        %1098 = vmatprep.subr.mxu0 0.0
        %1099 = vmatpush1.msra.mxu0 0.0
        %1100 = vmatprep.subr.mxu0 0.0
        %1101 = vmatpush1.msra.mxu0 0.0
        %1102 = vmatprep.subr.mxu0 0.0
        %1103 = vmatpush1.msra.mxu0 0.0
        %1104 = vmatprep.subr.mxu0 0.0
        %1105 = vmatpush1.msra.mxu0 0.0
        %1106 = vmatprep.subr.mxu0 0.0
        %1107 = vmatpush1.msra.mxu0 0.0
        %1108 = vmatprep.subr.mxu0 0.0
        %1109 = vmatpush1.msra.mxu0 0.0
        %1110 = vmatprep.subr.mxu0 0.0
        %1111 = vmatpush1.msra.mxu0 0.0
        %1112 = vmatprep.subr.mxu0 0.0
        %1113 = vmatpush1.msra.mxu0 0.0
        %1114 = vmatprep.subr.mxu0 0.0
        %1115 = vmatpush1.msra.mxu0 0.0
        %1116 = vmatprep.subr.mxu0 0.0
        %1117 = vmatpush1.msra.mxu0 0.0
        %1118 = vmatprep.subr.mxu0 0.0
        %1119 = vmatpush1.msra.mxu0 0.0
        %1120 = vmatprep.subr.mxu0 0.0
        %1121 = vmatpush1.msra.mxu0 0.0
        %1122 = vmatprep.subr.mxu0 0.0
        %1123 = vmatpush1.msra.mxu0 0.0
        %1124 = vmatprep.subr.mxu0 0.0
        %1125 = vmatpush1.msra.mxu0 0.0
        %1126 = vmatprep.subr.mxu0 0.0
        %1127 = vmatpush1.msra.mxu0 0.0
        %1128 = vmatprep.subr.mxu0 0.0
        %1129 = vmatpush1.msra.mxu0 0.0
        %1130 = vmatprep.subr.mxu0 0.0
        %1131 = vmatpush1.msra.mxu0 0.0
        %1132 = vmatprep.subr.mxu0 0.0
        %1133 = vmatpush1.msra.mxu0 0.0
        %1134 = vmatprep.subr.mxu0 0.0
        %1135 = vmatpush1.msra.mxu0 0.0
        %1136 = vmatprep.subr.mxu0 0.0
        %1137 = vmatpush1.msra.mxu0 0.0
        %1138 = vmatprep.subr.mxu0 0.0
        %1139 = vmatpush1.msra.mxu0 0.0
        %1140 = vmatprep.subr.mxu0 0.0
        %1141 = vmatpush1.msra.mxu0 0.0
        %1142 = vmatprep.subr.mxu0 0.0
        %1143 = vmatpush1.msra.mxu0 0.0
        %1144 = vmatprep.subr.mxu0 0.0
        %1145 = vmatpush1.msra.mxu0 0.0
        %1146 = vmatprep.subr.mxu0 0.0
        %1147 = vmatpush1.msra.mxu0 0.0
        %1148 = vmatprep.subr.mxu0 0.0
        %1149 = vmatpush1.msra.mxu0 0.0
        %1150 = vmatprep.mubr.f32.mxu0 0.0
        %1151 = vmatmul.mubr.f32.gmra.mrb[0].mxu0 %v1081
        %v1152 = vpop.f32.mrb[0].mxu0
        %v1153 = vadd.f32 0.0, %v1152
        %v1154 = vpop.f32.mrb[0].mxu0
        %1155 = vmatprep.mubr.f32.mxu0 0.0
        %1156 = vmatmul.mubr.f32.gmra.mrb[0].mxu0 %v1084
        %v1157 = vpop.f32.mrb[0].mxu0
        %v1158 = vadd.f32 0.0, %v1157
        %v1159 = vpop.f32.mrb[0].mxu0
        %1160 = vdwg.mxu0
        %1161 = vrot.lane.b32.xlu0 %v678, 64
        %v1162 = vpop.permute.xlu0 %1161
        %1163 = vrot.lane.b32.xlu0 %v684, 64
        %v1164 = vpop.permute.xlu0 %1163
        %1165 = vrot.lane.b32.xlu0 %v680, 64
        %v1166 = vpop.permute.xlu0 %1165
        %1167 = vrot.lane.b32.xlu0 %v686, 64
        %v1168 = vpop.permute.xlu0 %1167
        %v1169 = vsel %vm763, %v1162, 0
        %v1171 = vsel %vm763, %v1164, 0
        %v1173 = vsel %vm763, %v1166, 0
        %v1175 = vsel %vm763, %v1168, 0
        %1177 = vmatprep.subr.mxu0 0.0
        %1178 = vmatpush1.xpose.msra.mxu0 %v1173
        %1179 = vmatprep.subr.mxu0 0.0
        %1180 = vmatpush1.xpose.msra.mxu0 %v1175
        %1181 = vmatprep.subr.mxu0 0.0
        %1182 = vmatpush1.xpose.msra.mxu0 0.0
        %1183 = vmatprep.subr.mxu0 0.0
        %1184 = vmatpush1.xpose.msra.mxu0 0.0
        %1185 = vmatprep.subr.mxu0 0.0
        %1186 = vmatpush1.xpose.msra.mxu0 0.0
        %1187 = vmatprep.subr.mxu0 0.0
        %1188 = vmatpush1.xpose.msra.mxu0 0.0
        %1189 = vmatprep.subr.mxu0 0.0
        %1190 = vmatpush1.xpose.msra.mxu0 0.0
        %1191 = vmatprep.subr.mxu0 0.0
        %1192 = vmatpush1.xpose.msra.mxu0 0.0
        %1193 = vmatprep.subr.mxu0 0.0
        %1194 = vmatpush1.xpose.msra.mxu0 0.0
        %1195 = vmatprep.subr.mxu0 0.0
        %1196 = vmatpush1.xpose.msra.mxu0 0.0
        %1197 = vmatprep.subr.mxu0 0.0
        %1198 = vmatpush1.xpose.msra.mxu0 0.0
        %1199 = vmatprep.subr.mxu0 0.0
        %1200 = vmatpush1.xpose.msra.mxu0 0.0
        %1201 = vmatprep.subr.mxu0 0.0
        %1202 = vmatpush1.xpose.msra.mxu0 0.0
        %1203 = vmatprep.subr.mxu0 0.0
        %1204 = vmatpush1.xpose.msra.mxu0 0.0
        %1205 = vmatprep.subr.mxu0 0.0
        %1206 = vmatpush1.xpose.msra.mxu0 0.0
        %1207 = vmatprep.subr.mxu0 0.0
        %1208 = vmatpush1.xpose.msra.mxu0 0.0
        %1209 = vmatprep.subr.mxu0 0.0
        %1210 = vmatpush1.xpose.msra.mxu0 0.0
        %1211 = vmatprep.subr.mxu0 0.0
        %1212 = vmatpush1.xpose.msra.mxu0 0.0
        %1213 = vmatprep.subr.mxu0 0.0
        %1214 = vmatpush1.xpose.msra.mxu0 0.0
        %1215 = vmatprep.subr.mxu0 0.0
        %1216 = vmatpush1.xpose.msra.mxu0 0.0
        %1217 = vmatprep.subr.mxu0 0.0
        %1218 = vmatpush1.xpose.msra.mxu0 0.0
        %1219 = vmatprep.subr.mxu0 0.0
        %1220 = vmatpush1.xpose.msra.mxu0 0.0
        %1221 = vmatprep.subr.mxu0 0.0
        %1222 = vmatpush1.xpose.msra.mxu0 0.0
        %1223 = vmatprep.subr.mxu0 0.0
        %1224 = vmatpush1.xpose.msra.mxu0 0.0
        %1225 = vmatprep.subr.mxu0 0.0
        %1226 = vmatpush1.xpose.msra.mxu0 0.0
        %1227 = vmatprep.subr.mxu0 0.0
        %1228 = vmatpush1.xpose.msra.mxu0 0.0
        %1229 = vmatprep.subr.mxu0 0.0
        %1230 = vmatpush1.xpose.msra.mxu0 0.0
        %1231 = vmatprep.subr.mxu0 0.0
        %1232 = vmatpush1.xpose.msra.mxu0 0.0
        %1233 = vmatprep.subr.mxu0 0.0
        %1234 = vmatpush1.xpose.msra.mxu0 0.0
        %1235 = vmatprep.subr.mxu0 0.0
        %1236 = vmatpush1.xpose.msra.mxu0 0.0
        %1237 = vmatprep.subr.mxu0 0.0
        %1238 = vmatpush1.xpose.msra.mxu0 0.0
        %1239 = vmatprep.subr.mxu0 0.0
        %1240 = vmatpush1.xpose.msra.mxu0 0.0
        %1241 = vmatprep.mubr.f32.mxu0 0.0
        %1242 = vmatmul.mubr.f32.gmra.mrb[0].mxu0 %v1169
        %v1243 = vpop.f32.mrb[0].mxu0
        %v1244 = vadd.f32 0.0, %v1243
        %v1245 = vpop.f32.mrb[0].mxu0
        %1246 = vmatprep.mubr.f32.mxu0 0.0
        %1247 = vmatmul.mubr.f32.gmra.mrb[0].mxu0 %v1171
        %v1248 = vpop.f32.mrb[0].mxu0
        %v1249 = vadd.f32 0.0, %v1248
        %v1250 = vpop.f32.mrb[0].mxu0
        %1251 = vdwg.mxu0
        %v1252 = vmul.f32 %v1244, 0.17677669
        %v1253 = vmul.f32 %v1249, 0.17677669
        %v1254 = vsel %vm853, %v1252, -inf
        %1255 = vmax.xlane.f32.xlu0 %v1254
        %v1256 = vpop.xlane.xlu0 %1255
        %v1257 = vsel %vm853, %v1253, -inf
        %1258 = vmax.xlane.f32.xlu0 %v1257
        %v1259 = vpop.xlane.xlu0 %1258
        %v1260 = vsub.f32 %v1252, %v1256
        %v1261 = vsub.f32 %v1253, %v1259
        %v1262 = vmul.f32 %v1260, 1.442695
        %v1263 = vpow.pop %v1262
        %v1264 = vmul.f32 %v1261, 1.442695
        %v1265 = vpow.pop %v1264
        %v1266 = vsel %vm853, %v1263, 0.0
        %1267 = vadd.xlane.f32.xlu0 %v1266
        %v1268 = vpop.xlane.xlu0 %1267
        %v1269 = vsel %vm853, %v1265, 0.0
        %1270 = vadd.xlane.f32.xlu0 %v1269
        %v1271 = vpop.xlane.xlu0 %1270
        %v1272 = vrcp.pop %v1268
        %v1273 = vrcp.pop %v1271
        %v1274 = vmul.f32 %v1263, %v1272
        %v1275 = vmul.f32 %v1265, %v1273
        %1276 = vrot.lane.b32.xlu0 %v755, 64
        %v1277 = vpop.permute.xlu0 %1276
        %1278 = vrot.lane.b32.xlu0 %v760, 64
        %v1279 = vpop.permute.xlu0 %1278
        %v1283 = vsel %vm853, %v1274, 0
        %v1286 = vsel %vm853, %v1275, 0
        %1288 = vmatprep.subr.mxu0 0.0
        %1289 = vmatpush1.msra.mxu0 %v1277
        %1290 = vmatprep.subr.mxu0 0.0
        %1291 = vmatpush1.msra.mxu0 %v1279
        %1292 = vmatprep.subr.mxu0 0.0
        %1293 = vmatpush1.msra.mxu0 0.0
        %1294 = vmatprep.subr.mxu0 0.0
        %1295 = vmatpush1.msra.mxu0 0.0
        %1296 = vmatprep.subr.mxu0 0.0
        %1297 = vmatpush1.msra.mxu0 0.0
        %1298 = vmatprep.subr.mxu0 0.0
        %1299 = vmatpush1.msra.mxu0 0.0
        %1300 = vmatprep.subr.mxu0 0.0
        %1301 = vmatpush1.msra.mxu0 0.0
        %1302 = vmatprep.subr.mxu0 0.0
        %1303 = vmatpush1.msra.mxu0 0.0
        %1304 = vmatprep.subr.mxu0 0.0
        %1305 = vmatpush1.msra.mxu0 0.0
        %1306 = vmatprep.subr.mxu0 0.0
        %1307 = vmatpush1.msra.mxu0 0.0
        %1308 = vmatprep.subr.mxu0 0.0
        %1309 = vmatpush1.msra.mxu0 0.0
        %1310 = vmatprep.subr.mxu0 0.0
        %1311 = vmatpush1.msra.mxu0 0.0
        %1312 = vmatprep.subr.mxu0 0.0
        %1313 = vmatpush1.msra.mxu0 0.0
        %1314 = vmatprep.subr.mxu0 0.0
        %1315 = vmatpush1.msra.mxu0 0.0
        %1316 = vmatprep.subr.mxu0 0.0
        %1317 = vmatpush1.msra.mxu0 0.0
        %1318 = vmatprep.subr.mxu0 0.0
        %1319 = vmatpush1.msra.mxu0 0.0
        %1320 = vmatprep.subr.mxu0 0.0
        %1321 = vmatpush1.msra.mxu0 0.0
        %1322 = vmatprep.subr.mxu0 0.0
        %1323 = vmatpush1.msra.mxu0 0.0
        %1324 = vmatprep.subr.mxu0 0.0
        %1325 = vmatpush1.msra.mxu0 0.0
        %1326 = vmatprep.subr.mxu0 0.0
        %1327 = vmatpush1.msra.mxu0 0.0
        %1328 = vmatprep.subr.mxu0 0.0
        %1329 = vmatpush1.msra.mxu0 0.0
        %1330 = vmatprep.subr.mxu0 0.0
        %1331 = vmatpush1.msra.mxu0 0.0
        %1332 = vmatprep.subr.mxu0 0.0
        %1333 = vmatpush1.msra.mxu0 0.0
        %1334 = vmatprep.subr.mxu0 0.0
        %1335 = vmatpush1.msra.mxu0 0.0
        %1336 = vmatprep.subr.mxu0 0.0
        %1337 = vmatpush1.msra.mxu0 0.0
        %1338 = vmatprep.subr.mxu0 0.0
        %1339 = vmatpush1.msra.mxu0 0.0
        %1340 = vmatprep.subr.mxu0 0.0
        %1341 = vmatpush1.msra.mxu0 0.0
        %1342 = vmatprep.subr.mxu0 0.0
        %1343 = vmatpush1.msra.mxu0 0.0
        %1344 = vmatprep.subr.mxu0 0.0
        %1345 = vmatpush1.msra.mxu0 0.0
        %1346 = vmatprep.subr.mxu0 0.0
        %1347 = vmatpush1.msra.mxu0 0.0
        %1348 = vmatprep.subr.mxu0 0.0
        %1349 = vmatpush1.msra.mxu0 0.0
        %1350 = vmatprep.subr.mxu0 0.0
        %1351 = vmatpush1.msra.mxu0 0.0
        %1352 = vmatprep.mubr.f32.mxu0 0.0
        %1353 = vmatmul.mubr.f32.gmra.mrb[0].mxu0 %v1283
        %v1354 = vpop.f32.mrb[0].mxu0
        %v1355 = vadd.f32 0.0, %v1354
        %v1356 = vpop.f32.mrb[0].mxu0
        %1357 = vmatprep.mubr.f32.mxu0 0.0
        %1358 = vmatmul.mubr.f32.gmra.mrb[0].mxu0 %v1286
        %v1359 = vpop.f32.mrb[0].mxu0
        %v1360 = vadd.f32 0.0, %v1359
        %v1361 = vpop.f32.mrb[0].mxu0
        %1362 = vdwg.mxu0
        %1363 = vrot.lane.b32.xlu0 %v678, 32
        %v1364 = vpop.permute.xlu0 %1363
        %1365 = vrot.lane.b32.xlu0 %v684, 32
        %v1366 = vpop.permute.xlu0 %1365
        %1367 = vrot.lane.b32.xlu0 %v680, 32
        %v1368 = vpop.permute.xlu0 %1367
        %1369 = vrot.lane.b32.xlu0 %v686, 32
        %v1370 = vpop.permute.xlu0 %1369
        %v1371 = vsel %vm763, %v1364, 0
        %v1373 = vsel %vm763, %v1366, 0
        %v1375 = vsel %vm763, %v1368, 0
        %v1377 = vsel %vm763, %v1370, 0
        %1379 = vmatprep.subr.mxu0 0.0
        %1380 = vmatpush1.xpose.msra.mxu0 %v1375
        %1381 = vmatprep.subr.mxu0 0.0
        %1382 = vmatpush1.xpose.msra.mxu0 %v1377
        %1383 = vmatprep.subr.mxu0 0.0
        %1384 = vmatpush1.xpose.msra.mxu0 0.0
        %1385 = vmatprep.subr.mxu0 0.0
        %1386 = vmatpush1.xpose.msra.mxu0 0.0
        %1387 = vmatprep.subr.mxu0 0.0
        %1388 = vmatpush1.xpose.msra.mxu0 0.0
        %1389 = vmatprep.subr.mxu0 0.0
        %1390 = vmatpush1.xpose.msra.mxu0 0.0
        %1391 = vmatprep.subr.mxu0 0.0
        %1392 = vmatpush1.xpose.msra.mxu0 0.0
        %1393 = vmatprep.subr.mxu0 0.0
        %1394 = vmatpush1.xpose.msra.mxu0 0.0
        %1395 = vmatprep.subr.mxu0 0.0
        %1396 = vmatpush1.xpose.msra.mxu0 0.0
        %1397 = vmatprep.subr.mxu0 0.0
        %1398 = vmatpush1.xpose.msra.mxu0 0.0
        %1399 = vmatprep.subr.mxu0 0.0
        %1400 = vmatpush1.xpose.msra.mxu0 0.0
        %1401 = vmatprep.subr.mxu0 0.0
        %1402 = vmatpush1.xpose.msra.mxu0 0.0
        %1403 = vmatprep.subr.mxu0 0.0
        %1404 = vmatpush1.xpose.msra.mxu0 0.0
        %1405 = vmatprep.subr.mxu0 0.0
        %1406 = vmatpush1.xpose.msra.mxu0 0.0
        %1407 = vmatprep.subr.mxu0 0.0
        %1408 = vmatpush1.xpose.msra.mxu0 0.0
        %1409 = vmatprep.subr.mxu0 0.0
        %1410 = vmatpush1.xpose.msra.mxu0 0.0
        %1411 = vmatprep.subr.mxu0 0.0
        %1412 = vmatpush1.xpose.msra.mxu0 0.0
        %1413 = vmatprep.subr.mxu0 0.0
        %1414 = vmatpush1.xpose.msra.mxu0 0.0
        %1415 = vmatprep.subr.mxu0 0.0
        %1416 = vmatpush1.xpose.msra.mxu0 0.0
        %1417 = vmatprep.subr.mxu0 0.0
        %1418 = vmatpush1.xpose.msra.mxu0 0.0
        %1419 = vmatprep.subr.mxu0 0.0
        %1420 = vmatpush1.xpose.msra.mxu0 0.0
        %1421 = vmatprep.subr.mxu0 0.0
        %1422 = vmatpush1.xpose.msra.mxu0 0.0
        %1423 = vmatprep.subr.mxu0 0.0
        %1424 = vmatpush1.xpose.msra.mxu0 0.0
        %1425 = vmatprep.subr.mxu0 0.0
        %1426 = vmatpush1.xpose.msra.mxu0 0.0
        %1427 = vmatprep.subr.mxu0 0.0
        %1428 = vmatpush1.xpose.msra.mxu0 0.0
        %1429 = vmatprep.subr.mxu0 0.0
        %1430 = vmatpush1.xpose.msra.mxu0 0.0
        %1431 = vmatprep.subr.mxu0 0.0
        %1432 = vmatpush1.xpose.msra.mxu0 0.0
        %1433 = vmatprep.subr.mxu0 0.0
        %1434 = vmatpush1.xpose.msra.mxu0 0.0
        %1435 = vmatprep.subr.mxu0 0.0
        %1436 = vmatpush1.xpose.msra.mxu0 0.0
        %1437 = vmatprep.subr.mxu0 0.0
        %1438 = vmatpush1.xpose.msra.mxu0 0.0
        %1439 = vmatprep.subr.mxu0 0.0
        %1440 = vmatpush1.xpose.msra.mxu0 0.0
        %1441 = vmatprep.subr.mxu0 0.0
        %1442 = vmatpush1.xpose.msra.mxu0 0.0
        %1443 = vmatprep.mubr.f32.mxu0 0.0
        %1444 = vmatmul.mubr.f32.gmra.mrb[0].mxu0 %v1371
        %v1445 = vpop.f32.mrb[0].mxu0
        %v1446 = vadd.f32 0.0, %v1445
        %v1447 = vpop.f32.mrb[0].mxu0
        %1448 = vmatprep.mubr.f32.mxu0 0.0
        %1449 = vmatmul.mubr.f32.gmra.mrb[0].mxu0 %v1373
        %v1450 = vpop.f32.mrb[0].mxu0
        %v1451 = vadd.f32 0.0, %v1450
        %v1452 = vpop.f32.mrb[0].mxu0
        %1453 = vdwg.mxu0
        %v1454 = vmul.f32 %v1446, 0.17677669
        %v1455 = vmul.f32 %v1451, 0.17677669
        %v1456 = vsel %vm853, %v1454, -inf
        %1457 = vmax.xlane.f32.xlu0 %v1456
        %v1458 = vpop.xlane.xlu0 %1457
        %v1459 = vsel %vm853, %v1455, -inf
        %1460 = vmax.xlane.f32.xlu0 %v1459
        %v1461 = vpop.xlane.xlu0 %1460
        %v1462 = vsub.f32 %v1454, %v1458
        %v1463 = vsub.f32 %v1455, %v1461
        %v1464 = vmul.f32 %v1462, 1.442695
        %v1465 = vpow.pop %v1464
        %v1466 = vmul.f32 %v1463, 1.442695
        %v1467 = vpow.pop %v1466
        %v1468 = vsel %vm853, %v1465, 0.0
        %1469 = vadd.xlane.f32.xlu0 %v1468
        %v1470 = vpop.xlane.xlu0 %1469
        %v1471 = vsel %vm853, %v1467, 0.0
        %1472 = vadd.xlane.f32.xlu0 %v1471
        %v1473 = vpop.xlane.xlu0 %1472
        %v1474 = vrcp.pop %v1470
        %v1475 = vrcp.pop %v1473
        %v1476 = vmul.f32 %v1465, %v1474
        %v1477 = vmul.f32 %v1467, %v1475
        %1478 = vrot.lane.b32.xlu0 %v755, 32
        %v1479 = vpop.permute.xlu0 %1478
        %1480 = vrot.lane.b32.xlu0 %v760, 32
        %v1481 = vpop.permute.xlu0 %1480
        %v1485 = vsel %vm853, %v1476, 0
        %v1488 = vsel %vm853, %v1477, 0
        %1490 = vmatprep.subr.mxu0 0.0
        %1491 = vmatpush1.msra.mxu0 %v1479
        %1492 = vmatprep.subr.mxu0 0.0
        %1493 = vmatpush1.msra.mxu0 %v1481
        %1494 = vmatprep.subr.mxu0 0.0
        %1495 = vmatpush1.msra.mxu0 0.0
        %1496 = vmatprep.subr.mxu0 0.0
        %1497 = vmatpush1.msra.mxu0 0.0
        %1498 = vmatprep.subr.mxu0 0.0
        %1499 = vmatpush1.msra.mxu0 0.0
        %1500 = vmatprep.subr.mxu0 0.0
        %1501 = vmatpush1.msra.mxu0 0.0
        %1502 = vmatprep.subr.mxu0 0.0
        %1503 = vmatpush1.msra.mxu0 0.0
        %1504 = vmatprep.subr.mxu0 0.0
        %1505 = vmatpush1.msra.mxu0 0.0
        %1506 = vmatprep.subr.mxu0 0.0
        %1507 = vmatpush1.msra.mxu0 0.0
        %1508 = vmatprep.subr.mxu0 0.0
        %1509 = vmatpush1.msra.mxu0 0.0
        %1510 = vmatprep.subr.mxu0 0.0
        %1511 = vmatpush1.msra.mxu0 0.0
        %1512 = vmatprep.subr.mxu0 0.0
        %1513 = vmatpush1.msra.mxu0 0.0
        %1514 = vmatprep.subr.mxu0 0.0
        %1515 = vmatpush1.msra.mxu0 0.0
        %1516 = vmatprep.subr.mxu0 0.0
        %1517 = vmatpush1.msra.mxu0 0.0
        %1518 = vmatprep.subr.mxu0 0.0
        %1519 = vmatpush1.msra.mxu0 0.0
        %1520 = vmatprep.subr.mxu0 0.0
        %1521 = vmatpush1.msra.mxu0 0.0
        %1522 = vmatprep.subr.mxu0 0.0
        %1523 = vmatpush1.msra.mxu0 0.0
        %1524 = vmatprep.subr.mxu0 0.0
        %1525 = vmatpush1.msra.mxu0 0.0
        %1526 = vmatprep.subr.mxu0 0.0
        %1527 = vmatpush1.msra.mxu0 0.0
        %1528 = vmatprep.subr.mxu0 0.0
        %1529 = vmatpush1.msra.mxu0 0.0
        %1530 = vmatprep.subr.mxu0 0.0
        %1531 = vmatpush1.msra.mxu0 0.0
        %1532 = vmatprep.subr.mxu0 0.0
        %1533 = vmatpush1.msra.mxu0 0.0
        %1534 = vmatprep.subr.mxu0 0.0
        %1535 = vmatpush1.msra.mxu0 0.0
        %1536 = vmatprep.subr.mxu0 0.0
        %1537 = vmatpush1.msra.mxu0 0.0
        %1538 = vmatprep.subr.mxu0 0.0
        %1539 = vmatpush1.msra.mxu0 0.0
        %1540 = vmatprep.subr.mxu0 0.0
        %1541 = vmatpush1.msra.mxu0 0.0
        %1542 = vmatprep.subr.mxu0 0.0
        %1543 = vmatpush1.msra.mxu0 0.0
        %1544 = vmatprep.subr.mxu0 0.0
        %1545 = vmatpush1.msra.mxu0 0.0
        %1546 = vmatprep.subr.mxu0 0.0
        %1547 = vmatpush1.msra.mxu0 0.0
        %1548 = vmatprep.subr.mxu0 0.0
        %1549 = vmatpush1.msra.mxu0 0.0
        %1550 = vmatprep.subr.mxu0 0.0
        %1551 = vmatpush1.msra.mxu0 0.0
        %1552 = vmatprep.subr.mxu0 0.0
        %1553 = vmatpush1.msra.mxu0 0.0
        %1554 = vmatprep.mubr.f32.mxu0 0.0
        %1555 = vmatmul.mubr.f32.gmra.mrb[0].mxu0 %v1485
        %v1556 = vpop.f32.mrb[0].mxu0
        %v1557 = vadd.f32 0.0, %v1556
        %v1558 = vpop.f32.mrb[0].mxu0
        %1559 = vmatprep.mubr.f32.mxu0 0.0
        %1560 = vmatmul.mubr.f32.gmra.mrb[0].mxu0 %v1488
        %v1561 = vpop.f32.mrb[0].mxu0
        %v1562 = vadd.f32 0.0, %v1561
        %v1563 = vpop.f32.mrb[0].mxu0
        %1564 = vdwg.mxu0
        %1567 = vrot.lane.b32.xlu0 %v1153, 32
        %v1568 = vpop.permute.xlu0 %1567
        %1569 = vrot.lane.b32.xlu0 %v1158, 32
        %v1570 = vpop.permute.xlu0 %1569
        %1575 = vrot.lane.b32.xlu0 %v1355, 64
        %v1576 = vpop.permute.xlu0 %1575
        %1577 = vrot.lane.b32.xlu0 %v1360, 64
        %v1578 = vpop.permute.xlu0 %1577
        %1583 = vrot.lane.b32.xlu0 %v1557, 96
        %v1584 = vpop.permute.xlu0 %1583
        %1585 = vrot.lane.b32.xlu0 %v1562, 96
        %v1586 = vpop.permute.xlu0 %1585
        %v1589 = vsel %vm763, %v949, %v1568
        %v1590 = vsel %vm763, %v954, %v1570
        %vm1591 = vcmask 523264
        %v1592 = vsel %vm1591, %v1589, %v1576
        %v1593 = vsel %vm1591, %v1590, %v1578
        %vm1594 = vcmask 785408
        %v1595 = vsel %vm1594, %v1592, %v1584
        %v1596 = vsel %vm1594, %v1593, %v1586
        %v1597 = vld [vmem:[#allocation4] sm:$0xff]
        %v1598 = vld [vmem:[#allocation4 + $0x8] sm:$0xff]
        %v1599 = vld [vmem:[#allocation4 + $0x10] sm:$0xff]
        %v1600 = vld [vmem:[#allocation4 + $0x18] sm:$0xff]
        %v1601 = vld [vmem:[#allocation4 + $0x20] sm:$0xff]
        %v1602 = vld [vmem:[#allocation4 + $0x28] sm:$0xff]
        %v1603 = vld [vmem:[#allocation4 + $0x30] sm:$0xff]
        %v1604 = vld [vmem:[#allocation4 + $0x38] sm:$0xff]
        %v1605 = vld [vmem:[#allocation4 + $0x40] sm:$0xff]
        %v1606 = vld [vmem:[#allocation4 + $0x48] sm:$0xff]
        %v1607 = vld [vmem:[#allocation4 + $0x50] sm:$0xff]
        %v1608 = vld [vmem:[#allocation4 + $0x58] sm:$0xff]
        %v1609 = vld [vmem:[#allocation4 + $0x60] sm:$0xff]
        %v1610 = vld [vmem:[#allocation4 + $0x68] sm:$0xff]
        %v1611 = vld [vmem:[#allocation4 + $0x70] sm:$0xff]
        %v1612 = vld [vmem:[#allocation4 + $0x78] sm:$0xff]
        %1613 = vmatprep.subr.mxu0 0.0
        %1614 = vmatpush1.msra.mxu0 %v1597
        %1615 = vmatprep.subr.mxu0 0.0
        %1616 = vmatpush1.msra.mxu0 %v1598
        %1617 = vmatprep.subr.mxu0 0.0
        %1618 = vmatpush1.msra.mxu0 %v1599
        %1619 = vmatprep.subr.mxu0 0.0
        %1620 = vmatpush1.msra.mxu0 %v1600
        %1621 = vmatprep.subr.mxu0 0.0
        %1622 = vmatpush1.msra.mxu0 %v1601
        %1623 = vmatprep.subr.mxu0 0.0
        %1624 = vmatpush1.msra.mxu0 %v1602
        %1625 = vmatprep.subr.mxu0 0.0
        %1626 = vmatpush1.msra.mxu0 %v1603
        %1627 = vmatprep.subr.mxu0 0.0
        %1628 = vmatpush1.msra.mxu0 %v1604
        %1629 = vmatprep.subr.mxu0 0.0
        %1630 = vmatpush1.msra.mxu0 %v1605
        %1631 = vmatprep.subr.mxu0 0.0
        %1632 = vmatpush1.msra.mxu0 %v1606
        %1633 = vmatprep.subr.mxu0 0.0
        %1634 = vmatpush1.msra.mxu0 %v1607
        %1635 = vmatprep.subr.mxu0 0.0
        %1636 = vmatpush1.msra.mxu0 %v1608
        %1637 = vmatprep.subr.mxu0 0.0
        %1638 = vmatpush1.msra.mxu0 %v1609
        %1639 = vmatprep.subr.mxu0 0.0
        %1640 = vmatpush1.msra.mxu0 %v1610
        %1641 = vmatprep.subr.mxu0 0.0
        %1642 = vmatpush1.msra.mxu0 %v1611
        %1643 = vmatprep.subr.mxu0 0.0
        %1644 = vmatpush1.msra.mxu0 %v1612
        %1645 = vmatprep.subr.mxu0 0.0
        %1646 = vmatpush1.msra.mxu0 0.0
        %1647 = vmatprep.subr.mxu0 0.0
        %1648 = vmatpush1.msra.mxu0 0.0
        %1649 = vmatprep.subr.mxu0 0.0
        %1650 = vmatpush1.msra.mxu0 0.0
        %1651 = vmatprep.subr.mxu0 0.0
        %1652 = vmatpush1.msra.mxu0 0.0
        %1653 = vmatprep.subr.mxu0 0.0
        %1654 = vmatpush1.msra.mxu0 0.0
        %1655 = vmatprep.subr.mxu0 0.0
        %1656 = vmatpush1.msra.mxu0 0.0
        %1657 = vmatprep.subr.mxu0 0.0
        %1658 = vmatpush1.msra.mxu0 0.0
        %1659 = vmatprep.subr.mxu0 0.0
        %1660 = vmatpush1.msra.mxu0 0.0
        %1661 = vmatprep.subr.mxu0 0.0
        %1662 = vmatpush1.msra.mxu0 0.0
        %1663 = vmatprep.subr.mxu0 0.0
        %1664 = vmatpush1.msra.mxu0 0.0
        %1665 = vmatprep.subr.mxu0 0.0
        %1666 = vmatpush1.msra.mxu0 0.0
        %1667 = vmatprep.subr.mxu0 0.0
        %1668 = vmatpush1.msra.mxu0 0.0
        %1669 = vmatprep.subr.mxu0 0.0
        %1670 = vmatpush1.msra.mxu0 0.0
        %1671 = vmatprep.subr.mxu0 0.0
        %1672 = vmatpush1.msra.mxu0 0.0
        %1673 = vmatprep.subr.mxu0 0.0
        %1674 = vmatpush1.msra.mxu0 0.0
        %1675 = vmatprep.subr.mxu0 0.0
        %1676 = vmatpush1.msra.mxu0 0.0
        %1677 = vmatprep.mubr.f32.mxu0 0.0
        %1678 = vmatmul.mubr.f32.gmra.mrb[0].mxu0 %v1595
        %v1679 = vpop.f32.mrb[0].mxu0
        %v1680 = vadd.f32 0.0, %v1679
        %v1681 = vpop.f32.mrb[0].mxu0
        %1682 = vmatprep.mubr.f32.mxu0 0.0
        %1683 = vmatmul.mubr.f32.gmra.mrb[0].mxu0 %v1596
        %v1684 = vpop.f32.mrb[0].mxu0
        %v1685 = vadd.f32 0.0, %v1684
        %v1686 = vpop.f32.mrb[0].mxu0
        %1687 = vdwg.mxu0
        %v1688 = vadd.f32 %v503, %v1680
        %v1689 = vadd.f32 %v504, %v1685
        %v1690 = vld [vmem:[%s6] sm:$0x1]
        %v1692 = vlaneseq
        %v1693 = vshrl.u32 %v1692, 7
        %v1694 = vsub.s32 0, %v1693
        %v1695 = vrot.slane %v1690, %v1694
        %v1697 = vadd.f32 %v1688, %v1695
        %v1698 = vadd.f32 %v1689, %v1695
        %v1699 = vld [vmem:[%s7] sm:$0x1]
        %v1700 = vld [vmem:[%s8] sm:$0x1]
        %1701 = vadd.xlane.f32.xlu0 %v1697
        %v1702 = vpop.xlane.xlu0 %1701
        %1703 = vadd.xlane.f32.xlu0 %v1698
        %v1704 = vpop.xlane.xlu0 %1703
        %v1705 = vmul.f32 %v1702, %v511
        %v1706 = vmul.f32 %v1704, %v511
        %v1707 = vsub.f32 %v1697, %v1705
        %v1708 = vsub.f32 %v1698, %v1706
        %v1709 = vmul.f32 %v1707, %v1707
        %v1710 = vmul.f32 %v1708, %v1708
        %1711 = vadd.xlane.f32.xlu0 %v1709
        %v1712 = vpop.xlane.xlu0 %1711
        %1713 = vadd.xlane.f32.xlu0 %v1710
        %v1714 = vpop.xlane.xlu0 %1713
        %v1715 = vmul.f32 %v1712, %v511
        %v1716 = vmul.f32 %v1714, %v511
        %v1717 = vadd.f32 %v1715, 1e-05
        %v1718 = vadd.f32 %v1716, 1e-05
        %v1719 = vrsqrt.pop %v1717
        %v1720 = vrsqrt.pop %v1718
        %v1721 = vmul.f32 %v1707, %v1719
        %v1722 = vmul.f32 %v1708, %v1720
        %v1724 = vlaneseq
        %v1725 = vshrl.u32 %v1724, 7
        %v1726 = vsub.s32 0, %v1725
        %v1727 = vrot.slane %v1699, %v1726
        %v1729 = vmul.f32 %v1721, %v1727
        %v1730 = vmul.f32 %v1722, %v1727
        %v1732 = vlaneseq
        %v1733 = vshrl.u32 %v1732, 7
        %v1734 = vsub.s32 0, %v1733
        %v1735 = vrot.slane %v1700, %v1734
        %v1737 = vadd.f32 %v1729, %v1735
        %v1738 = vadd.f32 %v1730, %v1735
        %v1739 = vld [vmem:[#allocation6] sm:$0xff]
        %v1740 = vld [vmem:[#allocation6 + $0x8] sm:$0xff]
        %v1741 = vld [vmem:[#allocation6 + $0x10] sm:$0xff]
        %v1742 = vld [vmem:[#allocation6 + $0x18] sm:$0xff]
        %v1743 = vld [vmem:[#allocation6 + $0x20] sm:$0xff]
        %v1744 = vld [vmem:[#allocation6 + $0x28] sm:$0xff]
        %v1745 = vld [vmem:[#allocation6 + $0x30] sm:$0xff]
        %v1746 = vld [vmem:[#allocation6 + $0x38] sm:$0xff]
        %v1747 = vld [vmem:[#allocation6 + $0x40] sm:$0xff]
        %v1748 = vld [vmem:[#allocation6 + $0x48] sm:$0xff]
        %v1749 = vld [vmem:[#allocation6 + $0x50] sm:$0xff]
        %v1750 = vld [vmem:[#allocation6 + $0x58] sm:$0xff]
        %v1751 = vld [vmem:[#allocation6 + $0x60] sm:$0xff]
        %v1752 = vld [vmem:[#allocation6 + $0x68] sm:$0xff]
        %v1753 = vld [vmem:[#allocation6 + $0x70] sm:$0xff]
        %v1754 = vld [vmem:[#allocation6 + $0x78] sm:$0xff]
        %v1755 = vld [vmem:[#allocation6 + $0x80] sm:$0xff]
        %v1756 = vld [vmem:[#allocation6 + $0x88] sm:$0xff]
        %v1757 = vld [vmem:[#allocation6 + $0x90] sm:$0xff]
        %v1758 = vld [vmem:[#allocation6 + $0x98] sm:$0xff]
        %v1759 = vld [vmem:[#allocation6 + $0xa0] sm:$0xff]
        %v1760 = vld [vmem:[#allocation6 + $0xa8] sm:$0xff]
        %v1761 = vld [vmem:[#allocation6 + $0xb0] sm:$0xff]
        %v1762 = vld [vmem:[#allocation6 + $0xb8] sm:$0xff]
        %v1763 = vld [vmem:[#allocation6 + $0xc0] sm:$0xff]
        %v1764 = vld [vmem:[#allocation6 + $0xc8] sm:$0xff]
        %v1765 = vld [vmem:[#allocation6 + $0xd0] sm:$0xff]
        %v1766 = vld [vmem:[#allocation6 + $0xd8] sm:$0xff]
        %v1767 = vld [vmem:[#allocation6 + $0xe0] sm:$0xff]
        %v1768 = vld [vmem:[#allocation6 + $0xe8] sm:$0xff]
        %v1769 = vld [vmem:[#allocation6 + $0xf0] sm:$0xff]
        %v1770 = vld [vmem:[#allocation6 + $0xf8] sm:$0xff]
        %v1771 = vld [vmem:[%s10] sm:$0x3]
        %v1773 = vlaneseq
        %v1774 = vshrl.u32 %v1773, 7
        %v1775 = vsub.s32 0, %v1774
        %v1776 = vrot.slane %v1771, %v1775
        %v1777 = vlaneseq
        %v1778 = vshrl.u32 %v1777, 7
        %v1779 = vsub.s32 1, %v1778
        %v1780 = vrot.slane %v1771, %v1779
        %1783 = vmatprep.subr.mxu0 %v1740
        %1784 = vmatpush1.msra.mxu0 %v1739
        %1785 = vmatprep.subr.mxu0 %v1742
        %1786 = vmatpush1.msra.mxu0 %v1741
        %1787 = vmatprep.subr.mxu0 %v1744
        %1788 = vmatpush1.msra.mxu0 %v1743
        %1789 = vmatprep.subr.mxu0 %v1746
        %1790 = vmatpush1.msra.mxu0 %v1745
        %1791 = vmatprep.subr.mxu0 %v1748
        %1792 = vmatpush1.msra.mxu0 %v1747
        %1793 = vmatprep.subr.mxu0 %v1750
        %1794 = vmatpush1.msra.mxu0 %v1749
        %1795 = vmatprep.subr.mxu0 %v1752
        %1796 = vmatpush1.msra.mxu0 %v1751
        %1797 = vmatprep.subr.mxu0 %v1754
        %1798 = vmatpush1.msra.mxu0 %v1753
        %1799 = vmatprep.subr.mxu0 %v1756
        %1800 = vmatpush1.msra.mxu0 %v1755
        %1801 = vmatprep.subr.mxu0 %v1758
        %1802 = vmatpush1.msra.mxu0 %v1757
        %1803 = vmatprep.subr.mxu0 %v1760
        %1804 = vmatpush1.msra.mxu0 %v1759
        %1805 = vmatprep.subr.mxu0 %v1762
        %1806 = vmatpush1.msra.mxu0 %v1761
        %1807 = vmatprep.subr.mxu0 %v1764
        %1808 = vmatpush1.msra.mxu0 %v1763
        %1809 = vmatprep.subr.mxu0 %v1766
        %1810 = vmatpush1.msra.mxu0 %v1765
        %1811 = vmatprep.subr.mxu0 %v1768
        %1812 = vmatpush1.msra.mxu0 %v1767
        %1813 = vmatprep.subr.mxu0 %v1770
        %1814 = vmatpush1.msra.mxu0 %v1769
        %1815 = vmatprep.subr.mxu0 0.0
        %1816 = vmatpush1.msra.mxu0 0.0
        %1817 = vmatprep.subr.mxu0 0.0
        %1818 = vmatpush1.msra.mxu0 0.0
        %1819 = vmatprep.subr.mxu0 0.0
        %1820 = vmatpush1.msra.mxu0 0.0
        %1821 = vmatprep.subr.mxu0 0.0
        %1822 = vmatpush1.msra.mxu0 0.0
        %1823 = vmatprep.subr.mxu0 0.0
        %1824 = vmatpush1.msra.mxu0 0.0
        %1825 = vmatprep.subr.mxu0 0.0
        %1826 = vmatpush1.msra.mxu0 0.0
        %1827 = vmatprep.subr.mxu0 0.0
        %1828 = vmatpush1.msra.mxu0 0.0
        %1829 = vmatprep.subr.mxu0 0.0
        %1830 = vmatpush1.msra.mxu0 0.0
        %1831 = vmatprep.subr.mxu0 0.0
        %1832 = vmatpush1.msra.mxu0 0.0
        %1833 = vmatprep.subr.mxu0 0.0
        %1834 = vmatpush1.msra.mxu0 0.0
        %1835 = vmatprep.subr.mxu0 0.0
        %1836 = vmatpush1.msra.mxu0 0.0
        %1837 = vmatprep.subr.mxu0 0.0
        %1838 = vmatpush1.msra.mxu0 0.0
        %1839 = vmatprep.subr.mxu0 0.0
        %1840 = vmatpush1.msra.mxu0 0.0
        %1841 = vmatprep.subr.mxu0 0.0
        %1842 = vmatpush1.msra.mxu0 0.0
        %1843 = vmatprep.subr.mxu0 0.0
        %1844 = vmatpush1.msra.mxu0 0.0
        %1845 = vmatprep.subr.mxu0 0.0
        %1846 = vmatpush1.msra.mxu0 0.0
        %1847 = vmatprep.mubr.f32.mxu0 0.0
        %1848 = vmatmul.mubr.f32.gmra.mrb[0].mxu0 %v1737
        %v1849 = vpop.f32.mrb[0].mxu0
        %v1850 = vadd.f32 %v1776, %v1849
        %v1851 = vpop.f32.mrb[0].mxu0
        %v1852 = vadd.f32 %v1780, %v1851
        %1853 = vmatprep.mubr.f32.mxu0 0.0
        %1854 = vmatmul.mubr.f32.gmra.mrb[0].mxu0 %v1738
        %v1855 = vpop.f32.mrb[0].mxu0
        %v1856 = vadd.f32 %v1776, %v1855
        %v1857 = vpop.f32.mrb[0].mxu0
        %v1858 = vadd.f32 %v1780, %v1857
        %1859 = vdwg.mxu0
        %v1860 = vmul.f32 %v1850, 0.5
        %v1861 = vmul.f32 %v1852, 0.5
        %v1862 = vmul.f32 %v1856, 0.5
        %v1863 = vmul.f32 %v1858, 0.5
        %v1864 = vmul.f32 %v1850, 0.70710677
        %v1865 = vmul.f32 %v1852, 0.70710677
        %v1866 = vmul.f32 %v1856, 0.70710677
        %v1867 = vmul.f32 %v1858, 0.70710677
        %v1868 = vsub.f32 0.0, %v1864
        %v1869 = vsub.f32 0.0, %v1865
        %v1870 = vsub.f32 0.0, %v1866
        %v1871 = vsub.f32 0.0, %v1867
        %v1872 = vmax.f32 %v1864, %v1868
        %v1873 = vmax.f32 %v1865, %v1869
        %v1874 = vmax.f32 %v1866, %v1870
        %v1875 = vmax.f32 %v1867, %v1871
        %v1876 = vmul.f32 %v1872, 0.3275911
        %v1877 = vmul.f32 %v1873, 0.3275911
        %v1878 = vmul.f32 %v1874, 0.3275911
        %v1879 = vmul.f32 %v1875, 0.3275911
        %v1880 = vadd.f32 %v1876, 1.0
        %v1881 = vadd.f32 %v1877, 1.0
        %v1882 = vadd.f32 %v1878, 1.0
        %v1883 = vadd.f32 %v1879, 1.0
        %v1884 = vrcp.pop %v1880
        %v1885 = vmul.f32 1.0, %v1884
        %v1886 = vrcp.pop %v1881
        %v1887 = vmul.f32 1.0, %v1886
        %v1888 = vrcp.pop %v1882
        %v1889 = vmul.f32 1.0, %v1888
        %v1890 = vrcp.pop %v1883
        %v1891 = vmul.f32 1.0, %v1890
        %v1892 = vmul.f32 %v1885, 1.0614054
        %v1893 = vmul.f32 %v1887, 1.0614054
        %v1894 = vmul.f32 %v1889, 1.0614054
        %v1895 = vmul.f32 %v1891, 1.0614054
        %v1896 = vadd.f32 %v1892, -1.4531521
        %v1897 = vadd.f32 %v1893, -1.4531521
        %v1898 = vadd.f32 %v1894, -1.4531521
        %v1899 = vadd.f32 %v1895, -1.4531521
        %v1900 = vmul.f32 %v1896, %v1885
        %v1901 = vmul.f32 %v1897, %v1887
        %v1902 = vmul.f32 %v1898, %v1889
        %v1903 = vmul.f32 %v1899, %v1891
        %v1904 = vadd.f32 %v1900, 1.4214138
        %v1905 = vadd.f32 %v1901, 1.4214138
        %v1906 = vadd.f32 %v1902, 1.4214138
        %v1907 = vadd.f32 %v1903, 1.4214138
        %v1908 = vmul.f32 %v1904, %v1885
        %v1909 = vmul.f32 %v1905, %v1887
        %v1910 = vmul.f32 %v1906, %v1889
        %v1911 = vmul.f32 %v1907, %v1891
        %v1912 = vadd.f32 %v1908, -0.28449672
        %v1913 = vadd.f32 %v1909, -0.28449672
        %v1914 = vadd.f32 %v1910, -0.28449672
        %v1915 = vadd.f32 %v1911, -0.28449672
        %v1916 = vmul.f32 %v1912, %v1885
        %v1917 = vmul.f32 %v1913, %v1887
        %v1918 = vmul.f32 %v1914, %v1889
        %v1919 = vmul.f32 %v1915, %v1891
        %v1920 = vadd.f32 %v1916, 0.2548296
        %v1921 = vadd.f32 %v1917, 0.2548296
        %v1922 = vadd.f32 %v1918, 0.2548296
        %v1923 = vadd.f32 %v1919, 0.2548296
        %v1924 = vmul.f32 %v1920, %v1885
        %v1925 = vmul.f32 %v1921, %v1887
        %v1926 = vmul.f32 %v1922, %v1889
        %v1927 = vmul.f32 %v1923, %v1891
        %v1928 = vmul.f32 %v1872, %v1872
        %v1929 = vmul.f32 %v1873, %v1873
        %v1930 = vmul.f32 %v1874, %v1874
        %v1931 = vmul.f32 %v1875, %v1875
        %v1932 = vsub.f32 0.0, %v1928
        %v1933 = vsub.f32 0.0, %v1929
        %v1934 = vsub.f32 0.0, %v1930
        %v1935 = vsub.f32 0.0, %v1931
        %v1936 = vmul.f32 %v1932, 1.442695
        %v1937 = vpow.pop %v1936
        %v1938 = vmul.f32 %v1933, 1.442695
        %v1939 = vpow.pop %v1938
        %v1940 = vmul.f32 %v1934, 1.442695
        %v1941 = vpow.pop %v1940
        %v1942 = vmul.f32 %v1935, 1.442695
        %v1943 = vpow.pop %v1942
        %v1944 = vmul.f32 %v1924, %v1937
        %v1945 = vmul.f32 %v1925, %v1939
        %v1946 = vmul.f32 %v1926, %v1941
        %v1947 = vmul.f32 %v1927, %v1943
        %v1948 = vsub.f32 1.0, %v1944
        %v1949 = vsub.f32 1.0, %v1945
        %v1950 = vsub.f32 1.0, %v1946
        %v1951 = vsub.f32 1.0, %v1947
        %vm1952 = vcmp.ge.f32.partialorder %v1864, 0.0
        %vm1953 = vcmp.ge.f32.partialorder %v1865, 0.0
        %vm1954 = vcmp.ge.f32.partialorder %v1866, 0.0
        %vm1955 = vcmp.ge.f32.partialorder %v1867, 0.0
        %v1956 = vsub.f32 0.0, %v1948
        %v1957 = vsub.f32 0.0, %v1949
        %v1958 = vsub.f32 0.0, %v1950
        %v1959 = vsub.f32 0.0, %v1951
        %v1960 = vsel %vm1952, %v1948, %v1956
        %v1961 = vsel %vm1953, %v1949, %v1957
        %v1962 = vsel %vm1954, %v1950, %v1958
        %v1963 = vsel %vm1955, %v1951, %v1959
        %v1964 = vadd.f32 %v1960, 1.0
        %v1965 = vadd.f32 %v1961, 1.0
        %v1966 = vadd.f32 %v1962, 1.0
        %v1967 = vadd.f32 %v1963, 1.0
        %v1968 = vmul.f32 %v1860, %v1964
        %v1969 = vmul.f32 %v1861, %v1965
        %v1970 = vmul.f32 %v1862, %v1966
        %v1971 = vmul.f32 %v1863, %v1967
        %v1972 = vld [vmem:[#allocation7] sm:$0xff]
        %v1973 = vld [vmem:[#allocation7 + $0x8] sm:$0xff]
        %v1974 = vld [vmem:[#allocation7 + $0x10] sm:$0xff]
        %v1975 = vld [vmem:[#allocation7 + $0x18] sm:$0xff]
        %v1976 = vld [vmem:[#allocation7 + $0x20] sm:$0xff]
        %v1977 = vld [vmem:[#allocation7 + $0x28] sm:$0xff]
        %v1978 = vld [vmem:[#allocation7 + $0x30] sm:$0xff]
        %v1979 = vld [vmem:[#allocation7 + $0x38] sm:$0xff]
        %v1980 = vld [vmem:[#allocation7 + $0x40] sm:$0xff]
        %v1981 = vld [vmem:[#allocation7 + $0x48] sm:$0xff]
        %v1982 = vld [vmem:[#allocation7 + $0x50] sm:$0xff]
        %v1983 = vld [vmem:[#allocation7 + $0x58] sm:$0xff]
        %v1984 = vld [vmem:[#allocation7 + $0x60] sm:$0xff]
        %v1985 = vld [vmem:[#allocation7 + $0x68] sm:$0xff]
        %v1986 = vld [vmem:[#allocation7 + $0x70] sm:$0xff]
        %v1987 = vld [vmem:[#allocation7 + $0x78] sm:$0xff]
        %v1988 = vld [vmem:[#allocation7 + $0x80] sm:$0xff]
        %v1989 = vld [vmem:[#allocation7 + $0x88] sm:$0xff]
        %v1990 = vld [vmem:[#allocation7 + $0x90] sm:$0xff]
        %v1991 = vld [vmem:[#allocation7 + $0x98] sm:$0xff]
        %v1992 = vld [vmem:[#allocation7 + $0xa0] sm:$0xff]
        %v1993 = vld [vmem:[#allocation7 + $0xa8] sm:$0xff]
        %v1994 = vld [vmem:[#allocation7 + $0xb0] sm:$0xff]
        %v1995 = vld [vmem:[#allocation7 + $0xb8] sm:$0xff]
        %v1996 = vld [vmem:[#allocation7 + $0xc0] sm:$0xff]
        %v1997 = vld [vmem:[#allocation7 + $0xc8] sm:$0xff]
        %v1998 = vld [vmem:[#allocation7 + $0xd0] sm:$0xff]
        %v1999 = vld [vmem:[#allocation7 + $0xd8] sm:$0xff]
        %v2000 = vld [vmem:[#allocation7 + $0xe0] sm:$0xff]
        %v2001 = vld [vmem:[#allocation7 + $0xe8] sm:$0xff]
        %v2002 = vld [vmem:[#allocation7 + $0xf0] sm:$0xff]
        %v2003 = vld [vmem:[#allocation7 + $0xf8] sm:$0xff]
        %v2004 = vld [vmem:[%s12] sm:$0x1]
        %v2006 = vlaneseq
        %v2007 = vshrl.u32 %v2006, 7
        %v2008 = vsub.s32 0, %v2007
        %v2009 = vrot.slane %v2004, %v2008
        %2011 = vmatprep.subr.mxu0 0.0
        %2012 = vmatpush1.msra.mxu0 %v1972
        %2013 = vmatprep.subr.mxu0 0.0
        %2014 = vmatpush1.msra.mxu0 %v1973
        %2015 = vmatprep.subr.mxu0 0.0
        %2016 = vmatpush1.msra.mxu0 %v1974
        %2017 = vmatprep.subr.mxu0 0.0
        %2018 = vmatpush1.msra.mxu0 %v1975
        %2019 = vmatprep.subr.mxu0 0.0
        %2020 = vmatpush1.msra.mxu0 %v1976
        %2021 = vmatprep.subr.mxu0 0.0
        %2022 = vmatpush1.msra.mxu0 %v1977
        %2023 = vmatprep.subr.mxu0 0.0
        %2024 = vmatpush1.msra.mxu0 %v1978
        %2025 = vmatprep.subr.mxu0 0.0
        %2026 = vmatpush1.msra.mxu0 %v1979
        %2027 = vmatprep.subr.mxu0 0.0
        %2028 = vmatpush1.msra.mxu0 %v1980
        %2029 = vmatprep.subr.mxu0 0.0
        %2030 = vmatpush1.msra.mxu0 %v1981
        %2031 = vmatprep.subr.mxu0 0.0
        %2032 = vmatpush1.msra.mxu0 %v1982
        %2033 = vmatprep.subr.mxu0 0.0
        %2034 = vmatpush1.msra.mxu0 %v1983
        %2035 = vmatprep.subr.mxu0 0.0
        %2036 = vmatpush1.msra.mxu0 %v1984
        %2037 = vmatprep.subr.mxu0 0.0
        %2038 = vmatpush1.msra.mxu0 %v1985
        %2039 = vmatprep.subr.mxu0 0.0
        %2040 = vmatpush1.msra.mxu0 %v1986
        %2041 = vmatprep.subr.mxu0 0.0
        %2042 = vmatpush1.msra.mxu0 %v1987
        %2043 = vmatprep.subr.mxu0 0.0
        %2044 = vmatpush1.msra.mxu0 %v1988
        %2045 = vmatprep.subr.mxu0 0.0
        %2046 = vmatpush1.msra.mxu0 %v1989
        %2047 = vmatprep.subr.mxu0 0.0
        %2048 = vmatpush1.msra.mxu0 %v1990
        %2049 = vmatprep.subr.mxu0 0.0
        %2050 = vmatpush1.msra.mxu0 %v1991
        %2051 = vmatprep.subr.mxu0 0.0
        %2052 = vmatpush1.msra.mxu0 %v1992
        %2053 = vmatprep.subr.mxu0 0.0
        %2054 = vmatpush1.msra.mxu0 %v1993
        %2055 = vmatprep.subr.mxu0 0.0
        %2056 = vmatpush1.msra.mxu0 %v1994
        %2057 = vmatprep.subr.mxu0 0.0
        %2058 = vmatpush1.msra.mxu0 %v1995
        %2059 = vmatprep.subr.mxu0 0.0
        %2060 = vmatpush1.msra.mxu0 %v1996
        %2061 = vmatprep.subr.mxu0 0.0
        %2062 = vmatpush1.msra.mxu0 %v1997
        %2063 = vmatprep.subr.mxu0 0.0
        %2064 = vmatpush1.msra.mxu0 %v1998
        %2065 = vmatprep.subr.mxu0 0.0
        %2066 = vmatpush1.msra.mxu0 %v1999
        %2067 = vmatprep.subr.mxu0 0.0
        %2068 = vmatpush1.msra.mxu0 %v2000
        %2069 = vmatprep.subr.mxu0 0.0
        %2070 = vmatpush1.msra.mxu0 %v2001
        %2071 = vmatprep.subr.mxu0 0.0
        %2072 = vmatpush1.msra.mxu0 %v2002
        %2073 = vmatprep.subr.mxu0 0.0
        %2074 = vmatpush1.msra.mxu0 %v2003
        %2075 = vmatprep.mubr.f32.mxu0 %v1969
        %2076 = vmatmul.mubr.f32.gmra.mrb[0].mxu0 %v1968
        %v2077 = vpop.f32.mrb[0].mxu0
        %v2078 = vadd.f32 %v2009, %v2077
        %v2079 = vpop.f32.mrb[0].mxu0
        %2080 = vmatprep.mubr.f32.mxu0 %v1971
        %2081 = vmatmul.mubr.f32.gmra.mrb[0].mxu0 %v1970
        %v2082 = vpop.f32.mrb[0].mxu0
        %v2083 = vadd.f32 %v2009, %v2082
        %v2084 = vpop.f32.mrb[0].mxu0
        %2085 = vdwg.mxu0
        %v2086 = vadd.f32 %v1697, %v2078
        %v2087 = vadd.f32 %v1698, %v2083
        %2088 = vst [vmem:[%s501] sm:$0xff] %v2086
        %2089 = vst [vmem:[%s501 + $0x8] sm:$0xff] %v2087
        %s2090 = smul.u32 2, %s27
        %p2091 = scmp.lt.s32.totalorder %s2090, 3
        %s2092 = scalar_select %p2091, %s2090, 3
        %s2093 = smul.addr %s2092, 8
        %s2094 = scalar_lea.vmem %s13, %s2093
        // Predicated region
        $region89: #{transformer_layer.1} parent=71 // pred_check
          %p2095 = pneg %p323
        $region90: #{transformer_layer.1} parent=71 // pred_check_branch
          %2097 = sbr.rel (%p2095) target = $region92
        $region91: #{transformer_layer.1} parent=71 // pred_region
          %s2098 = smul.u32 2, %s27
        $region92: #{transformer_layer.1} parent=71 // pred_fallthru
          _
      $region72: #{transformer_layer.1} parent=5 // pred_fallthru
        _
      %p2099 = scmp.le.s32.totalorder 2, %s22
      // Predicated region
      $region93: #{transformer_layer.1} parent=5 // pred_check
        %p2100 = pneg %p2099
      $region94: #{transformer_layer.1} parent=5 // pred_check_branch
        %2102 = sbr.rel (%p2100) target = $region96
      $region95: #{transformer_layer.1} parent=5 // pred_region
        %s2103 = ssub.s32 %s22, 2
        // Predicated region
        $region97: #{transformer_layer.1} parent=95 // pred_check
          %p2104 = pneg %p329
        $region98: #{transformer_layer.1} parent=95 // pred_check_branch
          %2106 = sbr.rel (%p2104) target = $region100
        $region99: #{transformer_layer.1} parent=95 // pred_region
          %s2107 = smul.u32 2, %s28
          %p2108 = scmp.lt.s32.totalorder %s2107, 3
          %s2109 = scalar_select %p2108, %s2107, 3
          %s2110 = smul.addr %s2109, 8
          %s2111 = scalar_lea.vmem %s13, %s2110
        $region100: #{transformer_layer.1} parent=95 // pred_fallthru
          _
      $region96: #{transformer_layer.1} parent=5 // pred_fallthru
        _
    $region6: #{transformer_layer.1} parent=1 // loop_footer
      %s26 = sadd.s32 1, %s22
    $region7: #{transformer_layer.1} parent=1 // loop_footer_branch
      %21 = sbr.rel target = $region3
    $region8: #{transformer_layer.1} parent=1 // loop_exit
      _
    %2112 = vsyncpa [#allocation3], 1
    %s2113 = scalar_lea.sflag [#allocation3], 1
    %2114 = vsyncpa %s2113, 1
    %2115 = vsyncpa [#allocation5], 1
    %2116 = vsyncpa [#allocation8], 1

</llo_original>
